<compile_context>
chip_gen: v7x
topology: tpu7x:2x2x1
jax: 0.10.0
libtpu: 0.0.40
codegen_flags: <defaults>
</compile_context>

<pallas_src>
import functools

import jax
import jax.numpy as jnp
import numpy as np
from jax.experimental import pallas as pl
from jax.experimental.pallas import tpu as pltpu


def _im2col_matmul(x_blk, w_mat, *, b, w, ho, mxu_dtype):
    """3x3 valid conv for B images as a single MXU matmul.

    x_blk: (B, Cin, (H+2)*W) f32 (pre-padded with 2 zero rows)
    w_mat: (Cout, 9*Cin) in the MXU dtype, K ordered as (ky, kx, cin)
    returns (Cout, B*Ho*W) f32; columns with (j % W) >= Wo are stride padding.
    """
    how = ho * w
    rhs_parts = []
    for bi in range(b):
        xi = x_blk[bi]                                     # (Cin, (H+2)*W)
        cols = [xi[:, dy * w + dx: dy * w + dx + how]      # plain lane slices
                for dy in range(3) for dx in range(3)]
        rhs_parts.append(jnp.concatenate(cols, axis=0))    # (9*Cin, Ho*W)
    rhs = jnp.concatenate(rhs_parts, axis=1) if b > 1 else rhs_parts[0]
    # bf16 operands into the MXU, f32 accumulation.
    return jnp.dot(w_mat, rhs.astype(mxu_dtype), preferred_element_type=jnp.float32)


# ---------------------------------------------------------------------------
# Fused single-kernel path: conv + stats + BN + ReLU, slab stays in VMEM.
# ---------------------------------------------------------------------------
def _fused_kernel(x_ref, w_ref, mask_ref, g_ref, b_ref, o_ref,
                  slab_ref, sum_ref, ssq_ref, scale_ref, shift_ref,
                  *, b, w, ho, wo, inv_count, eps, mxu_dtype):
    p = pl.program_id(0)    # phase: 0 = conv + stats, 1 = BN + ReLU + store
    nb = pl.program_id(1)   # image-block index
    how = ho * w

    @pl.when(p == 0)
    def _conv_phase():
        @pl.when(nb == 0)
        def _():
            sum_ref[...] = jnp.zeros_like(sum_ref)
            ssq_ref[...] = jnp.zeros_like(ssq_ref)

        acc = _im2col_matmul(x_ref[...], w_ref[...], b=b, w=w, ho=ho,
                             mxu_dtype=mxu_dtype)           # (Cout, B*Ho*W) f32
        av = acc * mask_ref[...]                             # zero stride-padding cols
        sum_ref[...] += jnp.sum(av, axis=1, keepdims=True)
        ssq_ref[...] += jnp.sum(av * av, axis=1, keepdims=True)
        # Park the conv result on-chip (bf16) -- never touches HBM.
        slab_ref[nb] = acc.astype(slab_ref.dtype)

    @pl.when(p == 1)
    def _bn_relu_phase():
        @pl.when(nb == 0)
        def _():
            # Finalize batch stats exactly once.
            mean = sum_ref[...] * inv_count                   # (Cout, 1)
            var = jnp.maximum(ssq_ref[...] * inv_count - mean * mean, 0.0)
            scale = g_ref[...] * jax.lax.rsqrt(var + eps)     # rsqrt -> EUP slot
            scale_ref[...] = scale
            shift_ref[...] = b_ref[...] - mean * scale

        y = slab_ref[nb].astype(jnp.float32) * scale_ref[...] + shift_ref[...]
        y = jnp.maximum(y, 0.0).astype(o_ref.dtype)           # (Cout, B*Ho*W)
        # Write an already-compacted (Cout, Ho*Wo) layout per image: drops the
        # stride-padding columns in-kernel, so the wrapper needs no XLA crop.
        for bi in range(b):
            base = bi * how
            for r in range(ho):
                o_ref[bi, :, r * wo:(r + 1) * wo] = y[:, base + r * w: base + r * w + wo]


# ---------------------------------------------------------------------------
# Two-pass fallback (slab too big for VMEM): bf16 slab through HBM.
# ---------------------------------------------------------------------------
def _conv_stats_kernel(x_ref, w_ref, mask_ref, y_ref, s_ref, *, b, w, ho, mxu_dtype):
    how = ho * w
    acc = _im2col_matmul(x_ref[...], w_ref[...], b=b, w=w, ho=ho, mxu_dtype=mxu_dtype)
    av = acc * mask_ref[...]
    s = jnp.sum(av, axis=1, keepdims=True)
    ss = jnp.sum(av * av, axis=1, keepdims=True)
    s_ref[0] = jnp.concatenate([s, ss], axis=1)       # (Cout, 2); tiny, masked store OK
    for bi in range(b):
        y_ref[bi] = acc[:, bi * how:(bi + 1) * how].astype(y_ref.dtype)   # bf16 slab


def _bn_relu_kernel(y_ref, s_ref, g_ref, b_ref, o_ref, *, b, w, ho, wo, inv_count, eps):
    # scale/shift re-derived per step (a few hundred flops) so the batch axis can
    # stay "parallel" (megacore) instead of serializing on a scratch dependency.
    tot = jnp.sum(s_ref[...], axis=0)                 # (Cout, 2): [sum, sumsq]
    mean = tot[:, 0:1] * inv_count
    var = jnp.maximum(tot[:, 1:2] * inv_count - mean * mean, 0.0)
    scale = g_ref[...] * jax.lax.rsqrt(var + eps)
    shift = b_ref[...] - mean * scale
    for bi in range(b):
        y = y_ref[bi].astype(jnp.float32) * scale + shift
        y = jnp.maximum(y, 0.0).astype(o_ref.dtype)
        for r in range(ho):
            o_ref[bi, :, r * wo:(r + 1) * wo] = y[:, r * w: r * w + wo]


# ---------------------------------------------------------------------------
# Wrapper
# ---------------------------------------------------------------------------
def _pick_block_images(n, cin, cout, h, w, target_bytes=2 << 20):
    """Largest divisor of n whose per-step working set stays under target_bytes."""
    ho = h - 2
    best = 1
    for b in range(1, n + 1):
        if n % b:
            continue
        per_step = b * (cin * (h + 2) * w * 4          # padded input block (f32)
                        + 9 * cin * ho * w * 6         # im2col rhs (f32 build + bf16)
                        + cout * ho * w * 4)           # f32 accumulator
        if per_step <= target_bytes:
            best = b
    return best


def conv_block(x, weight, gamma, beta, eps=1e-5, *, mxu_dtype=jnp.bfloat16,
               block_images=None, vmem_budget_bytes=48 * 1024 * 1024,
               force_two_pass=False):
    """ConvBlock.forward: Conv2d(k=3, pad=0, bias=False) -> BatchNorm2d -> ReLU."""
    N, Cin, H, W = x.shape
    Cout = weight.shape[0]
    Ho, Wo = H - 2, W - 2
    HoW = Ho * W                 # stride-W flattened conv width (has padding cols)
    HPW = (H + 2) * W

    B = _pick_block_images(N, Cin, Cout, H, W) if block_images is None else block_images
    assert N % B == 0, "block_images must divide the batch"
    NB = N // B

    # Metadata-only reshape + one-time zero pad of 2 rows (wrapper-side, so the
    # kernel never builds a padded copy per step). No NCHW<->NHWC transposes.
    x_pad = jnp.pad(x.reshape(N, Cin, H * W), ((0, 0), (0, 0), (0, 2 * W)))
    # (Cout, Cin, 3, 3) -> (Cout, 9*Cin) in MXU dtype; K ordered (ky, kx, cin).
    w2d = jnp.transpose(weight, (0, 2, 3, 1)).reshape(Cout, 9 * Cin).astype(mxu_dtype)
    g2d = gamma.reshape(Cout, 1).astype(jnp.float32)
    b2d = beta.reshape(Cout, 1).astype(jnp.float32)
    # Compile-time-constant mask of valid output columns in the stride-W layout.
    mask = jnp.tile(jnp.arange(W) < Wo, (B * Ho,)).reshape(1, B * HoW).astype(jnp.float32)

    inv_count = 1.0 / float(N * Ho * Wo)
    slab_dtype = jnp.bfloat16
    itm = int(jnp.dtype(mxu_dtype).itemsize)

    # Rough VMEM working-set estimates (double-buffered blocks + temps + slab).
    x_blk = B * Cin * HPW * 4
    out_blk = B * Cout * Ho * Wo * int(jnp.dtype(x.dtype).itemsize)
    rhs_tmp = 9 * Cin * B * HoW * (4 + itm)
    acc_tmp = Cout * B * HoW * 4
    const_in = Cout * 9 * Cin * itm + B * HoW * 4 + 2 * Cout * 4
    step_bytes = 2 * x_blk + 2 * out_blk + rhs_tmp + acc_tmp + const_in + (1 << 20)
    slab_bytes = N * Cout * HoW * int(jnp.dtype(slab_dtype).itemsize)
    fused_est = step_bytes + slab_bytes

    use_fused = (not force_two_pass) and (fused_est <= vmem_budget_bytes)
    vmem_limit = int(min(64 << 20, max(32 << 20,
                                       2 * (fused_est if use_fused else step_bytes))))

    if use_fused:
        # Grid = (phase, image_block). State (slab + stats) lives in core-private
        # VMEM scratch, so both axes must be "arbitrary" (single core); the HBM
        # roundtrip of the conv slab is eliminated in exchange.
        out = pl.pallas_call(
            functools.partial(_fused_kernel, b=B, w=W, ho=Ho, wo=Wo,
                              inv_count=inv_count, eps=eps, mxu_dtype=mxu_dtype),
            grid=(2, NB),
            in_specs=[
                pl.BlockSpec((B, Cin, HPW),
                             lambda p, nb: (nb * (1 - p) + (NB - 1) * p, 0, 0)),
                pl.BlockSpec((Cout, 9 * Cin), lambda p, nb: (0, 0)),
                pl.BlockSpec((1, B * HoW), lambda p, nb: (0, 0)),
                pl.BlockSpec((Cout, 1), lambda p, nb: (0, 0)),
                pl.BlockSpec((Cout, 1), lambda p, nb: (0, 0)),
            ],
            out_specs=pl.BlockSpec((B, Cout, Ho * Wo), lambda p, nb: (nb * p, 0, 0)),
            out_shape=jax.ShapeDtypeStruct((N, Cout, Ho * Wo), x.dtype),
            scratch_shapes=[
                pltpu.VMEM((NB, Cout, B * HoW), slab_dtype),   # persistent conv slab
                pltpu.VMEM((Cout, 1), jnp.float32),            # running sum
                pltpu.VMEM((Cout, 1), jnp.float32),            # running sumsq
                pltpu.VMEM((Cout, 1), jnp.float32),            # scale
                pltpu.VMEM((Cout, 1), jnp.float32),            # shift
            ],
            compiler_params=pltpu.CompilerParams(
                dimension_semantics=("arbitrary", "arbitrary"),
                vmem_limit_bytes=vmem_limit),
        )(x_pad, w2d, mask, g2d, b2d)
    else:
        # Two-pass fallback: bf16 slab through HBM (half the intermediate traffic).
        conv_slab, stats = pl.pallas_call(
            functools.partial(_conv_stats_kernel, b=B, w=W, ho=Ho, mxu_dtype=mxu_dtype),
            grid=(NB,),
            in_specs=[
                pl.BlockSpec((B, Cin, HPW), lambda nb: (nb, 0, 0)),
                pl.BlockSpec((Cout, 9 * Cin), lambda nb: (0, 0)),
                pl.BlockSpec((1, B * HoW), lambda nb: (0, 0)),
            ],
            out_specs=[
                pl.BlockSpec((B, Cout, HoW), lambda nb: (nb, 0, 0)),
                pl.BlockSpec((1, Cout, 2), lambda nb: (nb, 0, 0)),
            ],
            out_shape=(
                jax.ShapeDtypeStruct((N, Cout, HoW), slab_dtype),
                jax.ShapeDtypeStruct((NB, Cout, 2), jnp.float32),
            ),
            compiler_params=pltpu.CompilerParams(
                dimension_semantics=("parallel",), vmem_limit_bytes=vmem_limit),
        )(x_pad, w2d, mask)

        out = pl.pallas_call(
            functools.partial(_bn_relu_kernel, b=B, w=W, ho=Ho, wo=Wo,
                              inv_count=inv_count, eps=eps),
            grid=(NB,),
            in_specs=[
                pl.BlockSpec((B, Cout, HoW), lambda nb: (nb, 0, 0)),
                pl.BlockSpec((NB, Cout, 2), lambda nb: (0, 0, 0)),
                pl.BlockSpec((Cout, 1), lambda nb: (0, 0)),
                pl.BlockSpec((Cout, 1), lambda nb: (0, 0)),
            ],
            out_specs=pl.BlockSpec((B, Cout, Ho * Wo), lambda nb: (nb, 0, 0)),
            out_shape=jax.ShapeDtypeStruct((N, Cout, Ho * Wo), x.dtype),
            compiler_params=pltpu.CompilerParams(
                dimension_semantics=("parallel",), vmem_limit_bytes=vmem_limit),
        )(conv_slab, stats, g2d, b2d)

    # Metadata-only split of the already-compacted last dim; no strided crop.
    return out.reshape(N, Cout, Ho, Wo)


def _reference(x, weight, gamma, beta, eps=1e-5):
    # Pure-JAX f32 reference with the module's semantics (sanity check only).
    conv = jax.lax.conv_general_dilated(
        x, weight, window_strides=(1, 1), padding="VALID",
        dimension_numbers=("NCHW", "OIHW", "NCHW"))
    mean = conv.mean(axis=(0, 2, 3), keepdims=True)
    var = ((conv - mean) ** 2).mean(axis=(0, 2, 3), keepdims=True)
    y = (conv - mean) * jax.lax.rsqrt(var + eps)
    y = y * gamma.reshape(1, -1, 1, 1) + beta.reshape(1, -1, 1, 1)
    return jnp.maximum(y, 0.0)


if __name__ == "__main__":
    key = jax.random.PRNGKey(0)
    k_x, k_w, k_g, k_b = jax.random.split(key, 4)

    N, Cin, Cout, H, W = 4, 4, 8, 16, 16

    x = jax.random.normal(k_x, (N, Cin, H, W), dtype=jnp.float32)
    w = 0.1 * jax.random.normal(k_w, (Cout, Cin, 3, 3), dtype=jnp.float32)
    # Non-trivial affine params to exercise scale/shift (PyTorch init would be 1/0).
    gamma = 1.0 + 0.1 * jax.random.normal(k_g, (Cout,), dtype=jnp.float32)
    beta = 0.1 * jax.random.normal(k_b, (Cout,), dtype=jnp.float32)

    ref = jax.block_until_ready(_reference(x, w, gamma, beta))

    # Fused path (default): 2 images per grid step -> grid (2 phases, 2 blocks).
    out_fused = jax.block_until_ready(conv_block(x, w, gamma, beta, block_images=2))
    # bf16 MXU operands + bf16 on-chip slab => bf16-level agreement with f32 ref.
    np.testing.assert_allclose(np.asarray(out_fused), np.asarray(ref),
                               rtol=2e-2, atol=2e-2)

    # Two-pass fallback path (exercised explicitly so both paths are verified).
    out_2p = jax.block_until_ready(
        conv_block(x, w, gamma, beta, block_images=2, force_two_pass=True))
    np.testing.assert_allclose(np.asarray(out_2p), np.asarray(ref),
                               rtol=2e-2, atol=2e-2)

    print("KERNEL_OK")
</pallas_src>

<mosaic_0001>
module attributes {stable_mosaic.version = 11 : i64} {
  func.func @_fused_kernel(%arg0: i32, %arg1: i32, %arg2: memref<2x4x288xf32, #tpu.memory_space<vmem>>, %arg3: memref<8x36xbf16, #tpu.memory_space<vmem>>, %arg4: memref<1x448xf32, #tpu.memory_space<vmem>>, %arg5: memref<8x1xf32, #tpu.memory_space<vmem>>, %arg6: memref<8x1xf32, #tpu.memory_space<vmem>>, %arg7: memref<2x8x196xf32, #tpu.memory_space<vmem>>, %arg8: memref<2x8x448xbf16, #tpu.memory_space<vmem>>, %arg9: memref<8x1xf32, #tpu.memory_space<vmem>>, %arg10: memref<8x1xf32, #tpu.memory_space<vmem>>, %arg11: memref<8x1xf32, #tpu.memory_space<vmem>>, %arg12: memref<8x1xf32, #tpu.memory_space<vmem>>) attributes {dimension_semantics = [#tpu.dimension_semantics<arbitrary>, #tpu.dimension_semantics<arbitrary>], iteration_bounds = array<i64: 2, 2>, scalar_prefetch = 0 : i64, scratch_operands = 5 : i64, tpu.core_type = #tpu.core_type<tc>, window_params = [{transform_indices = @transform_0, window_bounds = array<i64: 2, 4, 288>}, {pipeline_mode = #tpu.pipeline_mode<synchronous>, transform_indices = @transform_1, window_bounds = array<i64: 8, 36>}, {pipeline_mode = #tpu.pipeline_mode<synchronous>, transform_indices = @transform_2, window_bounds = array<i64: 1, 448>}, {pipeline_mode = #tpu.pipeline_mode<synchronous>, transform_indices = @transform_3, window_bounds = array<i64: 8, 1>}, {pipeline_mode = #tpu.pipeline_mode<synchronous>, transform_indices = @transform_4, window_bounds = array<i64: 8, 1>}, {transform_indices = @transform_5, window_bounds = array<i64: 2, 8, 196>}]} {
    %c0_i32 = arith.constant 0 : i32
    %0 = arith.cmpi eq, %arg0, %c0_i32 : i32
    %1 = arith.extui %0 : i1 to i32
    %c0_i32_0 = arith.constant 0 : i32
    %2 = arith.cmpi ne, %1, %c0_i32_0 : i32
    scf.if %2 {
      %c0_i32_2 = arith.constant 0 : i32
      %6 = arith.cmpi eq, %arg1, %c0_i32_2 : i32
      %7 = arith.extui %6 : i1 to i32
      %c0_i32_3 = arith.constant 0 : i32
      %8 = arith.cmpi ne, %7, %c0_i32_3 : i32
      scf.if %8 {
        %cst_22 = arith.constant 0.000000e+00 : f32
        %57 = vector.broadcast %cst_22 : f32 to vector<8x1xf32>
        %c0_23 = arith.constant 0 : index
        %c0_24 = arith.constant 0 : index
        %58 = vector.load %arg9[%c0_23, %c0_24] : memref<8x1xf32, #tpu.memory_space<vmem>>, vector<8x1xf32>
        tpu.vector_store %arg9[%c0_23, %c0_24], %57 {strides = array<i32>} : memref<8x1xf32, #tpu.memory_space<vmem>>, vector<8x1xf32>,
        %cst_25 = arith.constant 0.000000e+00 : f32
        %59 = vector.broadcast %cst_25 : f32 to vector<8x1xf32>
        %c0_26 = arith.constant 0 : index
        %c0_27 = arith.constant 0 : index
        %60 = vector.load %arg10[%c0_26, %c0_27] : memref<8x1xf32, #tpu.memory_space<vmem>>, vector<8x1xf32>
        tpu.vector_store %arg10[%c0_26, %c0_27], %59 {strides = array<i32>} : memref<8x1xf32, #tpu.memory_space<vmem>>, vector<8x1xf32>,
      } else {
      }
      %c0 = arith.constant 0 : index
      %c0_4 = arith.constant 0 : index
      %c0_5 = arith.constant 0 : index
      %9 = vector.load %arg2[%c0, %c0_4, %c0_5] : memref<2x4x288xf32, #tpu.memory_space<vmem>>, vector<2x4x288xf32>
      %c0_6 = arith.constant 0 : index
      %c0_7 = arith.constant 0 : index
      %10 = vector.load %arg3[%c0_6, %c0_7] : memref<8x36xbf16, #tpu.memory_space<vmem>>, vector<8x36xbf16>
      %11 = vector.extract_strided_slice %9 {offsets = [0, 0, 0], sizes = [1, 4, 288], strides = [1, 1, 1]} : vector<2x4x288xf32> to vector<1x4x288xf32>
      %12 = vector.shape_cast %11 : vector<1x4x288xf32> to vector<4x288xf32>
      %13 = vector.extract_strided_slice %12 {offsets = [0, 0], sizes = [4, 224], strides = [1, 1]} : vector<4x288xf32> to vector<4x224xf32>
      %14 = vector.extract_strided_slice %12 {offsets = [0, 1], sizes = [4, 224], strides = [1, 1]} : vector<4x288xf32> to vector<4x224xf32>
      %15 = vector.extract_strided_slice %12 {offsets = [0, 2], sizes = [4, 224], strides = [1, 1]} : vector<4x288xf32> to vector<4x224xf32>
      %16 = vector.extract_strided_slice %12 {offsets = [0, 16], sizes = [4, 224], strides = [1, 1]} : vector<4x288xf32> to vector<4x224xf32>
      %17 = vector.extract_strided_slice %12 {offsets = [0, 17], sizes = [4, 224], strides = [1, 1]} : vector<4x288xf32> to vector<4x224xf32>
      %18 = vector.extract_strided_slice %12 {offsets = [0, 18], sizes = [4, 224], strides = [1, 1]} : vector<4x288xf32> to vector<4x224xf32>
      %19 = vector.extract_strided_slice %12 {offsets = [0, 32], sizes = [4, 224], strides = [1, 1]} : vector<4x288xf32> to vector<4x224xf32>
      %20 = vector.extract_strided_slice %12 {offsets = [0, 33], sizes = [4, 224], strides = [1, 1]} : vector<4x288xf32> to vector<4x224xf32>
      %21 = vector.extract_strided_slice %12 {offsets = [0, 34], sizes = [4, 224], strides = [1, 1]} : vector<4x288xf32> to vector<4x224xf32>
      %22 = tpu.concatenate %13, %14, %15, %16, %17, %18, %19, %20, %21 in 0 : vector<4x224xf32>, vector<4x224xf32>, vector<4x224xf32>, vector<4x224xf32>, vector<4x224xf32>, vector<4x224xf32>, vector<4x224xf32>, vector<4x224xf32>, vector<4x224xf32> -> vector<36x224xf32>
      %23 = vector.extract_strided_slice %9 {offsets = [1, 0, 0], sizes = [1, 4, 288], strides = [1, 1, 1]} : vector<2x4x288xf32> to vector<1x4x288xf32>
      %24 = vector.shape_cast %23 : vector<1x4x288xf32> to vector<4x288xf32>
      %25 = vector.extract_strided_slice %24 {offsets = [0, 0], sizes = [4, 224], strides = [1, 1]} : vector<4x288xf32> to vector<4x224xf32>
      %26 = vector.extract_strided_slice %24 {offsets = [0, 1], sizes = [4, 224], strides = [1, 1]} : vector<4x288xf32> to vector<4x224xf32>
      %27 = vector.extract_strided_slice %24 {offsets = [0, 2], sizes = [4, 224], strides = [1, 1]} : vector<4x288xf32> to vector<4x224xf32>
      %28 = vector.extract_strided_slice %24 {offsets = [0, 16], sizes = [4, 224], strides = [1, 1]} : vector<4x288xf32> to vector<4x224xf32>
      %29 = vector.extract_strided_slice %24 {offsets = [0, 17], sizes = [4, 224], strides = [1, 1]} : vector<4x288xf32> to vector<4x224xf32>
      %30 = vector.extract_strided_slice %24 {offsets = [0, 18], sizes = [4, 224], strides = [1, 1]} : vector<4x288xf32> to vector<4x224xf32>
      %31 = vector.extract_strided_slice %24 {offsets = [0, 32], sizes = [4, 224], strides = [1, 1]} : vector<4x288xf32> to vector<4x224xf32>
      %32 = vector.extract_strided_slice %24 {offsets = [0, 33], sizes = [4, 224], strides = [1, 1]} : vector<4x288xf32> to vector<4x224xf32>
      %33 = vector.extract_strided_slice %24 {offsets = [0, 34], sizes = [4, 224], strides = [1, 1]} : vector<4x288xf32> to vector<4x224xf32>
      %34 = tpu.concatenate %25, %26, %27, %28, %29, %30, %31, %32, %33 in 0 : vector<4x224xf32>, vector<4x224xf32>, vector<4x224xf32>, vector<4x224xf32>, vector<4x224xf32>, vector<4x224xf32>, vector<4x224xf32>, vector<4x224xf32>, vector<4x224xf32> -> vector<36x224xf32>
      %35 = tpu.concatenate %22, %34 in 1 : vector<36x224xf32>, vector<36x224xf32> -> vector<36x448xf32>
      %36 = arith.truncf %35 : vector<36x448xf32> to vector<36x448xbf16>
      %cst = arith.constant dense<0.000000e+00> : vector<8x448xf32>
      %37 = tpu.matmul %10, %36, %cst {dimension_numbers = #tpu.dot_dimension_numbers<[1], [0], [0], [1], [0, 0, 1, 1], [], []>} : vector<8x36xbf16>, vector<36x448xbf16>, vector<8x448xf32> -> vector<8x448xf32>
      %c0_8 = arith.constant 0 : index
      %c0_9 = arith.constant 0 : index
      %38 = vector.load %arg4[%c0_8, %c0_9] : memref<1x448xf32, #tpu.memory_space<vmem>>, vector<1x448xf32>
      %39 = vector.broadcast %38 : vector<1x448xf32> to vector<8x448xf32>
      %40 = arith.mulf %37, %39 : vector<8x448xf32>
      %c0_10 = arith.constant 0 : index
      %c0_11 = arith.constant 0 : index
      %41 = vector.load %arg9[%c0_10, %c0_11] : memref<8x1xf32, #tpu.memory_space<vmem>>, vector<8x1xf32>
      %cst_12 = arith.constant dense<0.000000e+00> : vector<8xf32>
      %42 = vector.multi_reduction <add>, %40, %cst_12 [1] : vector<8x448xf32> to vector<8xf32>
      %43 = vector.shape_cast %42 : vector<8xf32> to vector<8x1xf32>
      %44 = arith.addf %41, %43 : vector<8x1xf32>
      %c0_13 = arith.constant 0 : index
      %c0_14 = arith.constant 0 : index
      %45 = vector.load %arg9[%c0_13, %c0_14] : memref<8x1xf32, #tpu.memory_space<vmem>>, vector<8x1xf32>
      tpu.vector_store %arg9[%c0_13, %c0_14], %44 {strides = array<i32>} : memref<8x1xf32, #tpu.memory_space<vmem>>, vector<8x1xf32>,
      %c0_15 = arith.constant 0 : index
      %c0_16 = arith.constant 0 : index
      %46 = vector.load %arg10[%c0_15, %c0_16] : memref<8x1xf32, #tpu.memory_space<vmem>>, vector<8x1xf32>
      %47 = arith.mulf %40, %40 : vector<8x448xf32>
      %cst_17 = arith.constant dense<0.000000e+00> : vector<8xf32>
      %48 = vector.multi_reduction <add>, %47, %cst_17 [1] : vector<8x448xf32> to vector<8xf32>
      %49 = vector.shape_cast %48 : vector<8xf32> to vector<8x1xf32>
      %50 = arith.addf %46, %49 : vector<8x1xf32>
      %c0_18 = arith.constant 0 : index
      %c0_19 = arith.constant 0 : index
      %51 = vector.load %arg10[%c0_18, %c0_19] : memref<8x1xf32, #tpu.memory_space<vmem>>, vector<8x1xf32>
      tpu.vector_store %arg10[%c0_18, %c0_19], %50 {strides = array<i32>} : memref<8x1xf32, #tpu.memory_space<vmem>>, vector<8x1xf32>,
      %52 = arith.truncf %37 : vector<8x448xf32> to vector<8x448xbf16>
      %53 = arith.index_cast %arg1 : i32 to index
      %c0_20 = arith.constant 0 : index
      %c0_21 = arith.constant 0 : index
      %54 = vector.load %arg8[%53, %c0_20, %c0_21] : memref<2x8x448xbf16, #tpu.memory_space<vmem>>, vector<1x8x448xbf16>
      %55 = vector.shape_cast %54 : vector<1x8x448xbf16> to vector<8x448xbf16>
      %56 = vector.shape_cast %52 : vector<8x448xbf16> to vector<1x8x448xbf16>
      tpu.vector_store %arg8[%53, %c0_20, %c0_21], %56 {strides = array<i32>} : memref<2x8x448xbf16, #tpu.memory_space<vmem>>, vector<1x8x448xbf16>,
    } else {
    }
    %c1_i32 = arith.constant 1 : i32
    %3 = arith.cmpi eq, %arg0, %c1_i32 : i32
    %4 = arith.extui %3 : i1 to i32
    %c0_i32_1 = arith.constant 0 : i32
    %5 = arith.cmpi ne, %4, %c0_i32_1 : i32
    scf.if %5 {
      %c0_i32_2 = arith.constant 0 : i32
      %6 = arith.cmpi eq, %arg1, %c0_i32_2 : i32
      %7 = arith.extui %6 : i1 to i32
      %c0_i32_3 = arith.constant 0 : i32
      %8 = arith.cmpi ne, %7, %c0_i32_3 : i32
      scf.if %8 {
        %c0_79 = arith.constant 0 : index
        %c0_80 = arith.constant 0 : index
        %133 = vector.load %arg9[%c0_79, %c0_80] : memref<8x1xf32, #tpu.memory_space<vmem>>, vector<8x1xf32>
        %cst_81 = arith.constant 0.00127551018 : f32
        %134 = vector.broadcast %cst_81 : f32 to vector<8x1xf32>
        %135 = arith.mulf %133, %134 : vector<8x1xf32>
        %c0_82 = arith.constant 0 : index
        %c0_83 = arith.constant 0 : index
        %136 = vector.load %arg10[%c0_82, %c0_83] : memref<8x1xf32, #tpu.memory_space<vmem>>, vector<8x1xf32>
        %cst_84 = arith.constant 0.00127551018 : f32
        %137 = vector.broadcast %cst_84 : f32 to vector<8x1xf32>
        %138 = arith.mulf %136, %137 : vector<8x1xf32>
        %139 = arith.mulf %135, %135 : vector<8x1xf32>
        %140 = arith.subf %138, %139 : vector<8x1xf32>
        %cst_85 = arith.constant 0.000000e+00 : f32
        %141 = vector.broadcast %cst_85 : f32 to vector<8x1xf32>
        %142 = arith.maximumf %140, %141 : vector<8x1xf32>
        %c0_86 = arith.constant 0 : index
        %c0_87 = arith.constant 0 : index
        %143 = vector.load %arg5[%c0_86, %c0_87] : memref<8x1xf32, #tpu.memory_space<vmem>>, vector<8x1xf32>
        %cst_88 = arith.constant 9.99999974E-6 : f32
        %144 = vector.broadcast %cst_88 : f32 to vector<8x1xf32>
        %145 = arith.addf %142, %144 : vector<8x1xf32>
        %146 = math.rsqrt %145 : vector<8x1xf32>
        %147 = arith.mulf %143, %146 : vector<8x1xf32>
        %c0_89 = arith.constant 0 : index
        %c0_90 = arith.constant 0 : index
        %148 = vector.load %arg11[%c0_89, %c0_90] : memref<8x1xf32, #tpu.memory_space<vmem>>, vector<8x1xf32>
        tpu.vector_store %arg11[%c0_89, %c0_90], %147 {strides = array<i32>} : memref<8x1xf32, #tpu.memory_space<vmem>>, vector<8x1xf32>,
        %c0_91 = arith.constant 0 : index
        %c0_92 = arith.constant 0 : index
        %149 = vector.load %arg6[%c0_91, %c0_92] : memref<8x1xf32, #tpu.memory_space<vmem>>, vector<8x1xf32>
        %150 = arith.mulf %135, %147 : vector<8x1xf32>
        %151 = arith.subf %149, %150 : vector<8x1xf32>
        %c0_93 = arith.constant 0 : index
        %c0_94 = arith.constant 0 : index
        %152 = vector.load %arg12[%c0_93, %c0_94] : memref<8x1xf32, #tpu.memory_space<vmem>>, vector<8x1xf32>
        tpu.vector_store %arg12[%c0_93, %c0_94], %151 {strides = array<i32>} : memref<8x1xf32, #tpu.memory_space<vmem>>, vector<8x1xf32>,
      } else {
      }
      %9 = arith.index_cast %arg1 : i32 to index
      %c0 = arith.constant 0 : index
      %c0_4 = arith.constant 0 : index
      %10 = vector.load %arg8[%9, %c0, %c0_4] : memref<2x8x448xbf16, #tpu.memory_space<vmem>>, vector<1x8x448xbf16>
      %11 = vector.shape_cast %10 : vector<1x8x448xbf16> to vector<8x448xbf16>
      %12 = arith.extf %11 : vector<8x448xbf16> to vector<8x448xf32>
      %c0_5 = arith.constant 0 : index
      %c0_6 = arith.constant 0 : index
      %13 = vector.load %arg11[%c0_5, %c0_6] : memref<8x1xf32, #tpu.memory_space<vmem>>, vector<8x1xf32>
      %14 = vector.broadcast %13 : vector<8x1xf32> to vector<8x448xf32>
      %15 = arith.mulf %12, %14 : vector<8x448xf32>
      %c0_7 = arith.constant 0 : index
      %c0_8 = arith.constant 0 : index
      %16 = vector.load %arg12[%c0_7, %c0_8] : memref<8x1xf32, #tpu.memory_space<vmem>>, vector<8x1xf32>
      %17 = vector.broadcast %16 : vector<8x1xf32> to vector<8x448xf32>
      %18 = arith.addf %15, %17 : vector<8x448xf32>
      %cst = arith.constant 0.000000e+00 : f32
      %19 = vector.broadcast %cst : f32 to vector<8x448xf32>
      %20 = arith.maximumf %18, %19 : vector<8x448xf32>
      %21 = vector.extract_strided_slice %20 {offsets = [0, 0], sizes = [8, 14], strides = [1, 1]} : vector<8x448xf32> to vector<8x14xf32>
      %c0_9 = arith.constant 0 : index
      %c0_10 = arith.constant 0 : index
      %c0_11 = arith.constant 0 : index
      %22 = vector.load %arg7[%c0_9, %c0_10, %c0_11] : memref<2x8x196xf32, #tpu.memory_space<vmem>>, vector<1x8x14xf32>
      %23 = vector.shape_cast %22 : vector<1x8x14xf32> to vector<8x14xf32>
      %24 = vector.shape_cast %21 : vector<8x14xf32> to vector<1x8x14xf32>
      tpu.vector_store %arg7[%c0_9, %c0_10, %c0_11], %24 {strides = array<i32>} : memref<2x8x196xf32, #tpu.memory_space<vmem>>, vector<1x8x14xf32>,
      %25 = vector.extract_strided_slice %20 {offsets = [0, 16], sizes = [8, 14], strides = [1, 1]} : vector<8x448xf32> to vector<8x14xf32>
      %c0_12 = arith.constant 0 : index
      %c0_13 = arith.constant 0 : index
      %c14 = arith.constant 14 : index
      %26 = vector.load %arg7[%c0_12, %c0_13, %c14] : memref<2x8x196xf32, #tpu.memory_space<vmem>>, vector<1x8x14xf32>
      %27 = vector.shape_cast %26 : vector<1x8x14xf32> to vector<8x14xf32>
      %28 = vector.shape_cast %25 : vector<8x14xf32> to vector<1x8x14xf32>
      tpu.vector_store %arg7[%c0_12, %c0_13, %c14], %28 {strides = array<i32>} : memref<2x8x196xf32, #tpu.memory_space<vmem>>, vector<1x8x14xf32>,
      %29 = vector.extract_strided_slice %20 {offsets = [0, 32], sizes = [8, 14], strides = [1, 1]} : vector<8x448xf32> to vector<8x14xf32>
      %c0_14 = arith.constant 0 : index
      %c0_15 = arith.constant 0 : index
      %c28 = arith.constant 28 : index
      %30 = vector.load %arg7[%c0_14, %c0_15, %c28] : memref<2x8x196xf32, #tpu.memory_space<vmem>>, vector<1x8x14xf32>
      %31 = vector.shape_cast %30 : vector<1x8x14xf32> to vector<8x14xf32>
      %32 = vector.shape_cast %29 : vector<8x14xf32> to vector<1x8x14xf32>
      tpu.vector_store %arg7[%c0_14, %c0_15, %c28], %32 {strides = array<i32>} : memref<2x8x196xf32, #tpu.memory_space<vmem>>, vector<1x8x14xf32>,
      %33 = vector.extract_strided_slice %20 {offsets = [0, 48], sizes = [8, 14], strides = [1, 1]} : vector<8x448xf32> to vector<8x14xf32>
      %c0_16 = arith.constant 0 : index
      %c0_17 = arith.constant 0 : index
      %c42 = arith.constant 42 : index
      %34 = vector.load %arg7[%c0_16, %c0_17, %c42] : memref<2x8x196xf32, #tpu.memory_space<vmem>>, vector<1x8x14xf32>
      %35 = vector.shape_cast %34 : vector<1x8x14xf32> to vector<8x14xf32>
      %36 = vector.shape_cast %33 : vector<8x14xf32> to vector<1x8x14xf32>
      tpu.vector_store %arg7[%c0_16, %c0_17, %c42], %36 {strides = array<i32>} : memref<2x8x196xf32, #tpu.memory_space<vmem>>, vector<1x8x14xf32>,
      %37 = vector.extract_strided_slice %20 {offsets = [0, 64], sizes = [8, 14], strides = [1, 1]} : vector<8x448xf32> to vector<8x14xf32>
      %c0_18 = arith.constant 0 : index
      %c0_19 = arith.constant 0 : index
      %c56 = arith.constant 56 : index
      %38 = vector.load %arg7[%c0_18, %c0_19, %c56] : memref<2x8x196xf32, #tpu.memory_space<vmem>>, vector<1x8x14xf32>
      %39 = vector.shape_cast %38 : vector<1x8x14xf32> to vector<8x14xf32>
      %40 = vector.shape_cast %37 : vector<8x14xf32> to vector<1x8x14xf32>
      tpu.vector_store %arg7[%c0_18, %c0_19, %c56], %40 {strides = array<i32>} : memref<2x8x196xf32, #tpu.memory_space<vmem>>, vector<1x8x14xf32>,
      %41 = vector.extract_strided_slice %20 {offsets = [0, 80], sizes = [8, 14], strides = [1, 1]} : vector<8x448xf32> to vector<8x14xf32>
      %c0_20 = arith.constant 0 : index
      %c0_21 = arith.constant 0 : index
      %c70 = arith.constant 70 : index
      %42 = vector.load %arg7[%c0_20, %c0_21, %c70] : memref<2x8x196xf32, #tpu.memory_space<vmem>>, vector<1x8x14xf32>
      %43 = vector.shape_cast %42 : vector<1x8x14xf32> to vector<8x14xf32>
      %44 = vector.shape_cast %41 : vector<8x14xf32> to vector<1x8x14xf32>
      tpu.vector_store %arg7[%c0_20, %c0_21, %c70], %44 {strides = array<i32>} : memref<2x8x196xf32, #tpu.memory_space<vmem>>, vector<1x8x14xf32>,
      %45 = vector.extract_strided_slice %20 {offsets = [0, 96], sizes = [8, 14], strides = [1, 1]} : vector<8x448xf32> to vector<8x14xf32>
      %c0_22 = arith.constant 0 : index
      %c0_23 = arith.constant 0 : index
      %c84 = arith.constant 84 : index
      %46 = vector.load %arg7[%c0_22, %c0_23, %c84] : memref<2x8x196xf32, #tpu.memory_space<vmem>>, vector<1x8x14xf32>
      %47 = vector.shape_cast %46 : vector<1x8x14xf32> to vector<8x14xf32>
      %48 = vector.shape_cast %45 : vector<8x14xf32> to vector<1x8x14xf32>
      tpu.vector_store %arg7[%c0_22, %c0_23, %c84], %48 {strides = array<i32>} : memref<2x8x196xf32, #tpu.memory_space<vmem>>, vector<1x8x14xf32>,
      %49 = vector.extract_strided_slice %20 {offsets = [0, 112], sizes = [8, 14], strides = [1, 1]} : vector<8x448xf32> to vector<8x14xf32>
      %c0_24 = arith.constant 0 : index
      %c0_25 = arith.constant 0 : index
      %c98 = arith.constant 98 : index
      %50 = vector.load %arg7[%c0_24, %c0_25, %c98] : memref<2x8x196xf32, #tpu.memory_space<vmem>>, vector<1x8x14xf32>
      %51 = vector.shape_cast %50 : vector<1x8x14xf32> to vector<8x14xf32>
      %52 = vector.shape_cast %49 : vector<8x14xf32> to vector<1x8x14xf32>
      tpu.vector_store %arg7[%c0_24, %c0_25, %c98], %52 {strides = array<i32>} : memref<2x8x196xf32, #tpu.memory_space<vmem>>, vector<1x8x14xf32>,
      %53 = vector.extract_strided_slice %20 {offsets = [0, 128], sizes = [8, 14], strides = [1, 1]} : vector<8x448xf32> to vector<8x14xf32>
      %c0_26 = arith.constant 0 : index
      %c0_27 = arith.constant 0 : index
      %c112 = arith.constant 112 : index
      %54 = vector.load %arg7[%c0_26, %c0_27, %c112] : memref<2x8x196xf32, #tpu.memory_space<vmem>>, vector<1x8x14xf32>
      %55 = vector.shape_cast %54 : vector<1x8x14xf32> to vector<8x14xf32>
      %56 = vector.shape_cast %53 : vector<8x14xf32> to vector<1x8x14xf32>
      tpu.vector_store %arg7[%c0_26, %c0_27, %c112], %56 {strides = array<i32>} : memref<2x8x196xf32, #tpu.memory_space<vmem>>, vector<1x8x14xf32>,
      %57 = vector.extract_strided_slice %20 {offsets = [0, 144], sizes = [8, 14], strides = [1, 1]} : vector<8x448xf32> to vector<8x14xf32>
      %c0_28 = arith.constant 0 : index
      %c0_29 = arith.constant 0 : index
      %c126 = arith.constant 126 : index
      %58 = vector.load %arg7[%c0_28, %c0_29, %c126] : memref<2x8x196xf32, #tpu.memory_space<vmem>>, vector<1x8x14xf32>
      %59 = vector.shape_cast %58 : vector<1x8x14xf32> to vector<8x14xf32>
      %60 = vector.shape_cast %57 : vector<8x14xf32> to vector<1x8x14xf32>
      tpu.vector_store %arg7[%c0_28, %c0_29, %c126], %60 {strides = array<i32>} : memref<2x8x196xf32, #tpu.memory_space<vmem>>, vector<1x8x14xf32>,
      %61 = vector.extract_strided_slice %20 {offsets = [0, 160], sizes = [8, 14], strides = [1, 1]} : vector<8x448xf32> to vector<8x14xf32>
      %c0_30 = arith.constant 0 : index
      %c0_31 = arith.constant 0 : index
      %c140 = arith.constant 140 : index
      %62 = vector.load %arg7[%c0_30, %c0_31, %c140] : memref<2x8x196xf32, #tpu.memory_space<vmem>>, vector<1x8x14xf32>
      %63 = vector.shape_cast %62 : vector<1x8x14xf32> to vector<8x14xf32>
      %64 = vector.shape_cast %61 : vector<8x14xf32> to vector<1x8x14xf32>
      tpu.vector_store %arg7[%c0_30, %c0_31, %c140], %64 {strides = array<i32>} : memref<2x8x196xf32, #tpu.memory_space<vmem>>, vector<1x8x14xf32>,
      %65 = vector.extract_strided_slice %20 {offsets = [0, 176], sizes = [8, 14], strides = [1, 1]} : vector<8x448xf32> to vector<8x14xf32>
      %c0_32 = arith.constant 0 : index
      %c0_33 = arith.constant 0 : index
      %c154 = arith.constant 154 : index
      %66 = vector.load %arg7[%c0_32, %c0_33, %c154] : memref<2x8x196xf32, #tpu.memory_space<vmem>>, vector<1x8x14xf32>
      %67 = vector.shape_cast %66 : vector<1x8x14xf32> to vector<8x14xf32>
      %68 = vector.shape_cast %65 : vector<8x14xf32> to vector<1x8x14xf32>
      tpu.vector_store %arg7[%c0_32, %c0_33, %c154], %68 {strides = array<i32>} : memref<2x8x196xf32, #tpu.memory_space<vmem>>, vector<1x8x14xf32>,
      %69 = vector.extract_strided_slice %20 {offsets = [0, 192], sizes = [8, 14], strides = [1, 1]} : vector<8x448xf32> to vector<8x14xf32>
      %c0_34 = arith.constant 0 : index
      %c0_35 = arith.constant 0 : index
      %c168 = arith.constant 168 : index
      %70 = vector.load %arg7[%c0_34, %c0_35, %c168] : memref<2x8x196xf32, #tpu.memory_space<vmem>>, vector<1x8x14xf32>
      %71 = vector.shape_cast %70 : vector<1x8x14xf32> to vector<8x14xf32>
      %72 = vector.shape_cast %69 : vector<8x14xf32> to vector<1x8x14xf32>
      tpu.vector_store %arg7[%c0_34, %c0_35, %c168], %72 {strides = array<i32>} : memref<2x8x196xf32, #tpu.memory_space<vmem>>, vector<1x8x14xf32>,
      %73 = vector.extract_strided_slice %20 {offsets = [0, 208], sizes = [8, 14], strides = [1, 1]} : vector<8x448xf32> to vector<8x14xf32>
      %c0_36 = arith.constant 0 : index
      %c0_37 = arith.constant 0 : index
      %c182 = arith.constant 182 : index
      %74 = vector.load %arg7[%c0_36, %c0_37, %c182] : memref<2x8x196xf32, #tpu.memory_space<vmem>>, vector<1x8x14xf32>
      %75 = vector.shape_cast %74 : vector<1x8x14xf32> to vector<8x14xf32>
      %76 = vector.shape_cast %73 : vector<8x14xf32> to vector<1x8x14xf32>
      tpu.vector_store %arg7[%c0_36, %c0_37, %c182], %76 {strides = array<i32>} : memref<2x8x196xf32, #tpu.memory_space<vmem>>, vector<1x8x14xf32>,
      %77 = vector.extract_strided_slice %20 {offsets = [0, 224], sizes = [8, 14], strides = [1, 1]} : vector<8x448xf32> to vector<8x14xf32>
      %c1 = arith.constant 1 : index
      %c0_38 = arith.constant 0 : index
      %c0_39 = arith.constant 0 : index
      %78 = vector.load %arg7[%c1, %c0_38, %c0_39] : memref<2x8x196xf32, #tpu.memory_space<vmem>>, vector<1x8x14xf32>
      %79 = vector.shape_cast %78 : vector<1x8x14xf32> to vector<8x14xf32>
      %80 = vector.shape_cast %77 : vector<8x14xf32> to vector<1x8x14xf32>
      tpu.vector_store %arg7[%c1, %c0_38, %c0_39], %80 {strides = array<i32>} : memref<2x8x196xf32, #tpu.memory_space<vmem>>, vector<1x8x14xf32>,
      %81 = vector.extract_strided_slice %20 {offsets = [0, 240], sizes = [8, 14], strides = [1, 1]} : vector<8x448xf32> to vector<8x14xf32>
      %c1_40 = arith.constant 1 : index
      %c0_41 = arith.constant 0 : index
      %c14_42 = arith.constant 14 : index
      %82 = vector.load %arg7[%c1_40, %c0_41, %c14_42] : memref<2x8x196xf32, #tpu.memory_space<vmem>>, vector<1x8x14xf32>
      %83 = vector.shape_cast %82 : vector<1x8x14xf32> to vector<8x14xf32>
      %84 = vector.shape_cast %81 : vector<8x14xf32> to vector<1x8x14xf32>
      tpu.vector_store %arg7[%c1_40, %c0_41, %c14_42], %84 {strides = array<i32>} : memref<2x8x196xf32, #tpu.memory_space<vmem>>, vector<1x8x14xf32>,
      %85 = vector.extract_strided_slice %20 {offsets = [0, 256], sizes = [8, 14], strides = [1, 1]} : vector<8x448xf32> to vector<8x14xf32>
      %c1_43 = arith.constant 1 : index
      %c0_44 = arith.constant 0 : index
      %c28_45 = arith.constant 28 : index
      %86 = vector.load %arg7[%c1_43, %c0_44, %c28_45] : memref<2x8x196xf32, #tpu.memory_space<vmem>>, vector<1x8x14xf32>
      %87 = vector.shape_cast %86 : vector<1x8x14xf32> to vector<8x14xf32>
      %88 = vector.shape_cast %85 : vector<8x14xf32> to vector<1x8x14xf32>
      tpu.vector_store %arg7[%c1_43, %c0_44, %c28_45], %88 {strides = array<i32>} : memref<2x8x196xf32, #tpu.memory_space<vmem>>, vector<1x8x14xf32>,
      %89 = vector.extract_strided_slice %20 {offsets = [0, 272], sizes = [8, 14], strides = [1, 1]} : vector<8x448xf32> to vector<8x14xf32>
      %c1_46 = arith.constant 1 : index
      %c0_47 = arith.constant 0 : index
      %c42_48 = arith.constant 42 : index
      %90 = vector.load %arg7[%c1_46, %c0_47, %c42_48] : memref<2x8x196xf32, #tpu.memory_space<vmem>>, vector<1x8x14xf32>
      %91 = vector.shape_cast %90 : vector<1x8x14xf32> to vector<8x14xf32>
      %92 = vector.shape_cast %89 : vector<8x14xf32> to vector<1x8x14xf32>
      tpu.vector_store %arg7[%c1_46, %c0_47, %c42_48], %92 {strides = array<i32>} : memref<2x8x196xf32, #tpu.memory_space<vmem>>, vector<1x8x14xf32>,
      %93 = vector.extract_strided_slice %20 {offsets = [0, 288], sizes = [8, 14], strides = [1, 1]} : vector<8x448xf32> to vector<8x14xf32>
      %c1_49 = arith.constant 1 : index
      %c0_50 = arith.constant 0 : index
      %c56_51 = arith.constant 56 : index
      %94 = vector.load %arg7[%c1_49, %c0_50, %c56_51] : memref<2x8x196xf32, #tpu.memory_space<vmem>>, vector<1x8x14xf32>
      %95 = vector.shape_cast %94 : vector<1x8x14xf32> to vector<8x14xf32>
      %96 = vector.shape_cast %93 : vector<8x14xf32> to vector<1x8x14xf32>
      tpu.vector_store %arg7[%c1_49, %c0_50, %c56_51], %96 {strides = array<i32>} : memref<2x8x196xf32, #tpu.memory_space<vmem>>, vector<1x8x14xf32>,
      %97 = vector.extract_strided_slice %20 {offsets = [0, 304], sizes = [8, 14], strides = [1, 1]} : vector<8x448xf32> to vector<8x14xf32>
      %c1_52 = arith.constant 1 : index
      %c0_53 = arith.constant 0 : index
      %c70_54 = arith.constant 70 : index
      %98 = vector.load %arg7[%c1_52, %c0_53, %c70_54] : memref<2x8x196xf32, #tpu.memory_space<vmem>>, vector<1x8x14xf32>
      %99 = vector.shape_cast %98 : vector<1x8x14xf32> to vector<8x14xf32>
      %100 = vector.shape_cast %97 : vector<8x14xf32> to vector<1x8x14xf32>
      tpu.vector_store %arg7[%c1_52, %c0_53, %c70_54], %100 {strides = array<i32>} : memref<2x8x196xf32, #tpu.memory_space<vmem>>, vector<1x8x14xf32>,
      %101 = vector.extract_strided_slice %20 {offsets = [0, 320], sizes = [8, 14], strides = [1, 1]} : vector<8x448xf32> to vector<8x14xf32>
      %c1_55 = arith.constant 1 : index
      %c0_56 = arith.constant 0 : index
      %c84_57 = arith.constant 84 : index
      %102 = vector.load %arg7[%c1_55, %c0_56, %c84_57] : memref<2x8x196xf32, #tpu.memory_space<vmem>>, vector<1x8x14xf32>
      %103 = vector.shape_cast %102 : vector<1x8x14xf32> to vector<8x14xf32>
      %104 = vector.shape_cast %101 : vector<8x14xf32> to vector<1x8x14xf32>
      tpu.vector_store %arg7[%c1_55, %c0_56, %c84_57], %104 {strides = array<i32>} : memref<2x8x196xf32, #tpu.memory_space<vmem>>, vector<1x8x14xf32>,
      %105 = vector.extract_strided_slice %20 {offsets = [0, 336], sizes = [8, 14], strides = [1, 1]} : vector<8x448xf32> to vector<8x14xf32>
      %c1_58 = arith.constant 1 : index
      %c0_59 = arith.constant 0 : index
      %c98_60 = arith.constant 98 : index
      %106 = vector.load %arg7[%c1_58, %c0_59, %c98_60] : memref<2x8x196xf32, #tpu.memory_space<vmem>>, vector<1x8x14xf32>
      %107 = vector.shape_cast %106 : vector<1x8x14xf32> to vector<8x14xf32>
      %108 = vector.shape_cast %105 : vector<8x14xf32> to vector<1x8x14xf32>
      tpu.vector_store %arg7[%c1_58, %c0_59, %c98_60], %108 {strides = array<i32>} : memref<2x8x196xf32, #tpu.memory_space<vmem>>, vector<1x8x14xf32>,
      %109 = vector.extract_strided_slice %20 {offsets = [0, 352], sizes = [8, 14], strides = [1, 1]} : vector<8x448xf32> to vector<8x14xf32>
      %c1_61 = arith.constant 1 : index
      %c0_62 = arith.constant 0 : index
      %c112_63 = arith.constant 112 : index
      %110 = vector.load %arg7[%c1_61, %c0_62, %c112_63] : memref<2x8x196xf32, #tpu.memory_space<vmem>>, vector<1x8x14xf32>
      %111 = vector.shape_cast %110 : vector<1x8x14xf32> to vector<8x14xf32>
      %112 = vector.shape_cast %109 : vector<8x14xf32> to vector<1x8x14xf32>
      tpu.vector_store %arg7[%c1_61, %c0_62, %c112_63], %112 {strides = array<i32>} : memref<2x8x196xf32, #tpu.memory_space<vmem>>, vector<1x8x14xf32>,
      %113 = vector.extract_strided_slice %20 {offsets = [0, 368], sizes = [8, 14], strides = [1, 1]} : vector<8x448xf32> to vector<8x14xf32>
      %c1_64 = arith.constant 1 : index
      %c0_65 = arith.constant 0 : index
      %c126_66 = arith.constant 126 : index
      %114 = vector.load %arg7[%c1_64, %c0_65, %c126_66] : memref<2x8x196xf32, #tpu.memory_space<vmem>>, vector<1x8x14xf32>
      %115 = vector.shape_cast %114 : vector<1x8x14xf32> to vector<8x14xf32>
      %116 = vector.shape_cast %113 : vector<8x14xf32> to vector<1x8x14xf32>
      tpu.vector_store %arg7[%c1_64, %c0_65, %c126_66], %116 {strides = array<i32>} : memref<2x8x196xf32, #tpu.memory_space<vmem>>, vector<1x8x14xf32>,
      %117 = vector.extract_strided_slice %20 {offsets = [0, 384], sizes = [8, 14], strides = [1, 1]} : vector<8x448xf32> to vector<8x14xf32>
      %c1_67 = arith.constant 1 : index
      %c0_68 = arith.constant 0 : index
      %c140_69 = arith.constant 140 : index
      %118 = vector.load %arg7[%c1_67, %c0_68, %c140_69] : memref<2x8x196xf32, #tpu.memory_space<vmem>>, vector<1x8x14xf32>
      %119 = vector.shape_cast %118 : vector<1x8x14xf32> to vector<8x14xf32>
      %120 = vector.shape_cast %117 : vector<8x14xf32> to vector<1x8x14xf32>
      tpu.vector_store %arg7[%c1_67, %c0_68, %c140_69], %120 {strides = array<i32>} : memref<2x8x196xf32, #tpu.memory_space<vmem>>, vector<1x8x14xf32>,
      %121 = vector.extract_strided_slice %20 {offsets = [0, 400], sizes = [8, 14], strides = [1, 1]} : vector<8x448xf32> to vector<8x14xf32>
      %c1_70 = arith.constant 1 : index
      %c0_71 = arith.constant 0 : index
      %c154_72 = arith.constant 154 : index
      %122 = vector.load %arg7[%c1_70, %c0_71, %c154_72] : memref<2x8x196xf32, #tpu.memory_space<vmem>>, vector<1x8x14xf32>
      %123 = vector.shape_cast %122 : vector<1x8x14xf32> to vector<8x14xf32>
      %124 = vector.shape_cast %121 : vector<8x14xf32> to vector<1x8x14xf32>
      tpu.vector_store %arg7[%c1_70, %c0_71, %c154_72], %124 {strides = array<i32>} : memref<2x8x196xf32, #tpu.memory_space<vmem>>, vector<1x8x14xf32>,
      %125 = vector.extract_strided_slice %20 {offsets = [0, 416], sizes = [8, 14], strides = [1, 1]} : vector<8x448xf32> to vector<8x14xf32>
      %c1_73 = arith.constant 1 : index
      %c0_74 = arith.constant 0 : index
      %c168_75 = arith.constant 168 : index
      %126 = vector.load %arg7[%c1_73, %c0_74, %c168_75] : memref<2x8x196xf32, #tpu.memory_space<vmem>>, vector<1x8x14xf32>
      %127 = vector.shape_cast %126 : vector<1x8x14xf32> to vector<8x14xf32>
      %128 = vector.shape_cast %125 : vector<8x14xf32> to vector<1x8x14xf32>
      tpu.vector_store %arg7[%c1_73, %c0_74, %c168_75], %128 {strides = array<i32>} : memref<2x8x196xf32, #tpu.memory_space<vmem>>, vector<1x8x14xf32>,
      %129 = vector.extract_strided_slice %20 {offsets = [0, 432], sizes = [8, 14], strides = [1, 1]} : vector<8x448xf32> to vector<8x14xf32>
      %c1_76 = arith.constant 1 : index
      %c0_77 = arith.constant 0 : index
      %c182_78 = arith.constant 182 : index
      %130 = vector.load %arg7[%c1_76, %c0_77, %c182_78] : memref<2x8x196xf32, #tpu.memory_space<vmem>>, vector<1x8x14xf32>
      %131 = vector.shape_cast %130 : vector<1x8x14xf32> to vector<8x14xf32>
      %132 = vector.shape_cast %129 : vector<8x14xf32> to vector<1x8x14xf32>
      tpu.vector_store %arg7[%c1_76, %c0_77, %c182_78], %132 {strides = array<i32>} : memref<2x8x196xf32, #tpu.memory_space<vmem>>, vector<1x8x14xf32>,
    } else {
    }
    return
  }
  func.func @transform_0(%arg0: i32, %arg1: i32) -> (i32, i32, i32) {
    %c1_i32 = arith.constant 1 : i32
    %0 = arith.subi %c1_i32, %arg0 : i32
    %1 = arith.muli %arg1, %0 : i32
    %c1_i32_0 = arith.constant 1 : i32
    %2 = arith.muli %c1_i32_0, %arg0 : i32
    %3 = arith.addi %1, %2 : i32
    %c0_i32 = arith.constant 0 : i32
    %c0_i32_1 = arith.constant 0 : i32
    %c0_i32_2 = arith.constant 0 : i32
    return %3, %c0_i32, %c0_i32_1 : i32, i32, i32
  }
  func.func @transform_1(%arg0: i32, %arg1: i32) -> (i32, i32) {
    %c0_i32 = arith.constant 0 : i32
    %c0_i32_0 = arith.constant 0 : i32
    %c0_i32_1 = arith.constant 0 : i32
    return %c0_i32, %c0_i32_0 : i32, i32
  }
  func.func @transform_2(%arg0: i32, %arg1: i32) -> (i32, i32) {
    %c0_i32 = arith.constant 0 : i32
    %c0_i32_0 = arith.constant 0 : i32
    %c0_i32_1 = arith.constant 0 : i32
    return %c0_i32, %c0_i32_0 : i32, i32
  }
  func.func @transform_3(%arg0: i32, %arg1: i32) -> (i32, i32) {
    %c0_i32 = arith.constant 0 : i32
    %c0_i32_0 = arith.constant 0 : i32
    %c0_i32_1 = arith.constant 0 : i32
    return %c0_i32, %c0_i32_0 : i32, i32
  }
  func.func @transform_4(%arg0: i32, %arg1: i32) -> (i32, i32) {
    %c0_i32 = arith.constant 0 : i32
    %c0_i32_0 = arith.constant 0 : i32
    %c0_i32_1 = arith.constant 0 : i32
    return %c0_i32, %c0_i32_0 : i32, i32
  }
  func.func @transform_5(%arg0: i32, %arg1: i32) -> (i32, i32, i32) {
    %0 = arith.muli %arg1, %arg0 : i32
    %c0_i32 = arith.constant 0 : i32
    %c0_i32_0 = arith.constant 0 : i32
    %c0_i32_1 = arith.constant 0 : i32
    return %0, %c0_i32, %c0_i32_0 : i32, i32, i32
  }
}

</mosaic_0001>

<llo_original>
// kernel: tpu_custom_call.1
$region0: #{tpu_custom_call.1}
  #allocation0 [shape = 'u32[]', space=smem, size = 0x4, offset = 0x4, fixed_abs, tag = 'smem constant byte address 0x4 - core index']
  #allocation1 [shape = 'u32[144,128]{1,0:T(1,128)}', space=vmem, size = 0x12000, scoped, tag = 'internal scratch']
  #allocation2 [shape = 'bf16[2,8,448]{2,1,0:T(8,128)(2,1)}', space=vmem, size = 0x4000, scoped, tag = 'scratch operand']
  #allocation3 [shape = 'f32[8,1]{1,0:T(8,128)}', space=vmem, size = 0x1000, scoped, tag = 'scratch operand']
  #allocation4 [shape = 'f32[8,1]{1,0:T(8,128)}', space=vmem, size = 0x1000, scoped, tag = 'scratch operand']
  #allocation5 [shape = 'f32[8,1]{1,0:T(8,128)}', space=vmem, size = 0x1000, scoped, tag = 'scratch operand']
  #allocation6 [shape = 'f32[8,1]{1,0:T(8,128)}', space=vmem, size = 0x1000, scoped, tag = 'scratch operand']
  %s0 = inlined_call_operand.hbm [shape: f32[4,4,288], index: 0, kind: input, shape index: {}]
  %s1 = inlined_call_operand.vmem [shape: bf16[8,36], index: 1, kind: input, shape index: {}]
  %s2 = inlined_call_operand.vmem [shape: f32[1,448], index: 2, kind: input, shape index: {}]
  %s3 = inlined_call_operand.vmem [shape: f32[8,1], index: 3, kind: input, shape index: {}]
  %s4 = inlined_call_operand.vmem [shape: f32[8,1], index: 4, kind: input, shape index: {}]
  %s5 = inlined_call_operand.hbm [shape: f32[4,8,196], index: 5, kind: output, shape index: {}]
  %s6 = sld [smem:[#allocation0]]
  $region73: #{tpu_custom_call.1} parent=0
    _
  %s8 = ssub.s32 1, %s6
  %s9 = scalar_select 0, %s8, %s6
  $region1: #{tpu_custom_call.1} parent=0
    #allocation7 [shape = 'u8[24576]{0}', space=vmem, size = 0x6000, scoped, tag = 'input window, operand 0']
    #allocation8 [shape = 's32[2]{0}', space=sflag, size = 0x8, scoped, tag = 'scoped memory for tpu_custom_call.1']
    #allocation9 [shape = 's32[2]{0}', space=sflag, size = 0x8, scoped, tag = 'scoped memory for tpu_custom_call.1']
    #allocation10 [shape = 'u8[32768]{0}', space=vmem, size = 0x8000, scoped, tag = 'output window, operand 0']
    %10 = vsyncpa [#allocation8], 0
    %s11 = scalar_lea.sflag [#allocation8], 1
    %12 = vsyncpa %s11, 0
    %13 = vsyncpa [#allocation9], 0
    %s14 = scalar_lea.sflag [#allocation9], 1
    %15 = vsyncpa %s14, 0
    loop: start=0, step=1, limit=6
    $region2: #{tpu_custom_call.1} parent=1 // loop_pre_header
      _
    $region3: #{tpu_custom_call.1} parent=1 // loop_header
      %s17 = sphi 0, %s21
      %p18 = scmp.ge.s32.totalorder %s17, 6
      %s24 = sphi 0, %s36
      %s25 = sphi 0, %s32
      %s26 = sphi 0, %s24
      %s27 = sphi 0, %s25
      %s28 = sphi 0, %s26
      %s29 = sphi 0, %s27
      %s45 = sphi 0, %s47
      %s48 = sphi 0, %s45
      %s49 = sphi 0, %s48
      %s65 = sphi 0, %s49
      %s69 = sphi 0, %s69
      %s71 = sphi 0, %s69
      %s72 = sphi 0, %s71
      %s86 = sphi 0, %s72
      %s90 = sphi 0, %s90
      %s92 = sphi 0, %s90
      %s93 = sphi 0, %s92
      %s107 = sphi 0, %s93
      %s111 = sphi 0, %s111
      %s113 = sphi 0, %s111
      %s114 = sphi 0, %s113
      %s128 = sphi 0, %s114
      %s132 = sphi 0, %s132
      %s134 = sphi 0, %s132
      %s135 = sphi 0, %s134
      %s149 = sphi 0, %s135
      %s157 = sphi 0, %s159
      %s160 = sphi 0, %s157
      %s161 = sphi 0, %s160
      %s177 = sphi 0, %s161
    $region4: #{tpu_custom_call.1} parent=1 // loop_header_branch
      %20 = sbr.rel (%p18) target = $region8
    $region5: #{tpu_custom_call.1} parent=1 // loop_body
      %s22 = ssub.s32 %s17, 1
      %s23 = ssub.s32 %s17, 2
      %s30 = sadd.s32 1, %s25
      %p31 = scmp.ge.s32.totalorder %s30, 2
      %s32 = scalar_select %p31, 0, %s30
      %s33 = sadd.s32 1, %s24
      %s34 = scalar_select %p31, %s33, %s24
      %p35 = scmp.ge.s32.totalorder %s34, 2
      %s36 = scalar_select %p35, 0, %s34
      %s37 = ssub.s32 1, %s24
      %s38 = smul.u32 %s25, %s37
      %s39 = sadd.s32 %s38, %s24
      %s40 = ssub.s32 1, %s36
      %s41 = smul.u32 %s32, %s40
      %s42 = sadd.s32 %s41, %s36
      %s43 = ssub.s32 %s39, %s42
      %p44 = scmp.eq.s32.totalorder %s43, 0
      %s46 = sadd.s32 %s45, 1
      %s47 = scalar_select %p44, %s45, %s46
      %p50 = pneg %p44
      %p51 = scmp.eq.s32.totalorder %s17, 3
      %p52 = por %p50, %p51
      %p53 = scmp.ne.s32.totalorder %s45, %s48
      %p54 = scmp.eq.s32.totalorder %s17, 0
      %p55 = por %p53, %p54
      %p56 = scmp.ne.s32.totalorder %s45, %s48
      %p57 = scmp.eq.s32.totalorder %s22, 3
      %p58 = por %p56, %p57
      %p59 = scmp.ne.s32.totalorder %s48, %s49
      %p60 = scmp.eq.s32.totalorder %s22, 0
      %p61 = por %p59, %p60
      %p62 = scmp.ne.s32.totalorder %s48, %s49
      %p63 = scmp.eq.s32.totalorder %s23, 3
      %p64 = por %p62, %p63
      %p66 = scmp.ne.s32.totalorder %s49, %s65
      %p67 = scmp.eq.s32.totalorder %s23, 0
      %p68 = por %p66, %p67
      %s70 = sadd.s32 %s69, 1
      %p73 = scmp.eq.s32.totalorder %s17, 3
      %p74 = scmp.ne.s32.totalorder %s69, %s71
      %p75 = scmp.eq.s32.totalorder %s17, 0
      %p76 = por %p74, %p75
      %p77 = scmp.ne.s32.totalorder %s69, %s71
      %p78 = scmp.eq.s32.totalorder %s22, 3
      %p79 = por %p77, %p78
      %p80 = scmp.ne.s32.totalorder %s71, %s72
      %p81 = scmp.eq.s32.totalorder %s22, 0
      %p82 = por %p80, %p81
      %p83 = scmp.ne.s32.totalorder %s71, %s72
      %p84 = scmp.eq.s32.totalorder %s23, 3
      %p85 = por %p83, %p84
      %p87 = scmp.ne.s32.totalorder %s72, %s86
      %p88 = scmp.eq.s32.totalorder %s23, 0
      %p89 = por %p87, %p88
      %s91 = sadd.s32 %s90, 1
      %p94 = scmp.eq.s32.totalorder %s17, 3
      %p95 = scmp.ne.s32.totalorder %s90, %s92
      %p96 = scmp.eq.s32.totalorder %s17, 0
      %p97 = por %p95, %p96
      %p98 = scmp.ne.s32.totalorder %s90, %s92
      %p99 = scmp.eq.s32.totalorder %s22, 3
      %p100 = por %p98, %p99
      %p101 = scmp.ne.s32.totalorder %s92, %s93
      %p102 = scmp.eq.s32.totalorder %s22, 0
      %p103 = por %p101, %p102
      %p104 = scmp.ne.s32.totalorder %s92, %s93
      %p105 = scmp.eq.s32.totalorder %s23, 3
      %p106 = por %p104, %p105
      %p108 = scmp.ne.s32.totalorder %s93, %s107
      %p109 = scmp.eq.s32.totalorder %s23, 0
      %p110 = por %p108, %p109
      %s112 = sadd.s32 %s111, 1
      %p115 = scmp.eq.s32.totalorder %s17, 3
      %p116 = scmp.ne.s32.totalorder %s111, %s113
      %p117 = scmp.eq.s32.totalorder %s17, 0
      %p118 = por %p116, %p117
      %p119 = scmp.ne.s32.totalorder %s111, %s113
      %p120 = scmp.eq.s32.totalorder %s22, 3
      %p121 = por %p119, %p120
      %p122 = scmp.ne.s32.totalorder %s113, %s114
      %p123 = scmp.eq.s32.totalorder %s22, 0
      %p124 = por %p122, %p123
      %p125 = scmp.ne.s32.totalorder %s113, %s114
      %p126 = scmp.eq.s32.totalorder %s23, 3
      %p127 = por %p125, %p126
      %p129 = scmp.ne.s32.totalorder %s114, %s128
      %p130 = scmp.eq.s32.totalorder %s23, 0
      %p131 = por %p129, %p130
      %s133 = sadd.s32 %s132, 1
      %p136 = scmp.eq.s32.totalorder %s17, 3
      %p137 = scmp.ne.s32.totalorder %s132, %s134
      %p138 = scmp.eq.s32.totalorder %s17, 0
      %p139 = por %p137, %p138
      %p140 = scmp.ne.s32.totalorder %s132, %s134
      %p141 = scmp.eq.s32.totalorder %s22, 3
      %p142 = por %p140, %p141
      %p143 = scmp.ne.s32.totalorder %s134, %s135
      %p144 = scmp.eq.s32.totalorder %s22, 0
      %p145 = por %p143, %p144
      %p146 = scmp.ne.s32.totalorder %s134, %s135
      %p147 = scmp.eq.s32.totalorder %s23, 3
      %p148 = por %p146, %p147
      %p150 = scmp.ne.s32.totalorder %s135, %s149
      %p151 = scmp.eq.s32.totalorder %s23, 0
      %p152 = por %p150, %p151
      %s153 = smul.u32 %s25, %s24
      %s154 = smul.u32 %s32, %s36
      %s155 = ssub.s32 %s153, %s154
      %p156 = scmp.eq.s32.totalorder %s155, 0
      %s158 = sadd.s32 %s157, 1
      %s159 = scalar_select %p156, %s157, %s158
      %p162 = pneg %p156
      %p163 = scmp.eq.s32.totalorder %s17, 3
      %p164 = por %p162, %p163
      %p165 = scmp.ne.s32.totalorder %s157, %s160
      %p166 = scmp.eq.s32.totalorder %s17, 0
      %p167 = por %p165, %p166
      %p168 = scmp.ne.s32.totalorder %s157, %s160
      %p169 = scmp.eq.s32.totalorder %s22, 3
      %p170 = por %p168, %p169
      %p171 = scmp.ne.s32.totalorder %s160, %s161
      %p172 = scmp.eq.s32.totalorder %s22, 0
      %p173 = por %p171, %p172
      %p174 = scmp.ne.s32.totalorder %s160, %s161
      %p175 = scmp.eq.s32.totalorder %s23, 3
      %p176 = por %p174, %p175
      %p178 = scmp.ne.s32.totalorder %s161, %s177
      %p179 = scmp.eq.s32.totalorder %s23, 0
      %p180 = por %p178, %p179
      %p181 = scmp.le.s32.totalorder 1, %s17
      %p182 = scmp.lt.s32.totalorder %s17, 5
      %p183 = pnand %p181, %p182
      %p184 = pneg %p183
      // Predicated region
      $region9: #{tpu_custom_call.1} parent=5 // pred_check
        _
      $region10: #{tpu_custom_call.1} parent=5 // pred_check_branch
        %186 = sbr.rel (%p183) target = $region12
      $region11: #{tpu_custom_call.1} parent=5 // pred_region
        %s187 = ssub.s32 %s17, 1
        // Predicated region
        $region13: #{tpu_custom_call.1} parent=11 // pred_check
          %p188 = pneg %p82
        $region14: #{tpu_custom_call.1} parent=11 // pred_check_branch
          %190 = sbr.rel (%p188) target = $region16
        $region15: #{tpu_custom_call.1} parent=11 // pred_region
          _
        $region16: #{tpu_custom_call.1} parent=11 // pred_fallthru
          _
        // Predicated region
        $region17: #{tpu_custom_call.1} parent=11 // pred_check
          %p191 = pneg %p103
        $region18: #{tpu_custom_call.1} parent=11 // pred_check_branch
          %193 = sbr.rel (%p191) target = $region20
        $region19: #{tpu_custom_call.1} parent=11 // pred_region
          _
        $region20: #{tpu_custom_call.1} parent=11 // pred_fallthru
          _
        // Predicated region
        $region21: #{tpu_custom_call.1} parent=11 // pred_check
          %p194 = pneg %p124
        $region22: #{tpu_custom_call.1} parent=11 // pred_check_branch
          %196 = sbr.rel (%p194) target = $region24
        $region23: #{tpu_custom_call.1} parent=11 // pred_region
          _
        $region24: #{tpu_custom_call.1} parent=11 // pred_fallthru
          _
        // Predicated region
        $region25: #{tpu_custom_call.1} parent=11 // pred_check
          %p197 = pneg %p145
        $region26: #{tpu_custom_call.1} parent=11 // pred_check_branch
          %199 = sbr.rel (%p197) target = $region28
        $region27: #{tpu_custom_call.1} parent=11 // pred_region
          _
        $region28: #{tpu_custom_call.1} parent=11 // pred_fallthru
          _
      $region12: #{tpu_custom_call.1} parent=5 // pred_fallthru
        _
      %p200 = scmp.lt.s32.totalorder %s17, 4
      // Predicated region
      $region29: #{tpu_custom_call.1} parent=5 // pred_check
        %p201 = pneg %p200
      $region30: #{tpu_custom_call.1} parent=5 // pred_check_branch
        %203 = sbr.rel (%p201) target = $region32
      $region31: #{tpu_custom_call.1} parent=5 // pred_region
        // Predicated region
        $region33: #{tpu_custom_call.1} parent=31 // pred_check
          %p204 = pneg %p55
        $region34: #{tpu_custom_call.1} parent=31 // pred_check_branch
          %206 = sbr.rel (%p204) target = $region36
        $region35: #{tpu_custom_call.1} parent=31 // pred_region
          %s207 = sand.u32 %s45, 1
          %s208 = scalar_lea.sflag [#allocation8], %s207
          %s209 = sand.u32 %s45, 1
          %s210 = smul.addr %s209, 24
          %s211 = scalar_lea.vmem [#allocation7], %s210
          %s212 = ssub.s32 1, %s24
          %s213 = smul.u32 %s25, %s212
          %s214 = sadd.s32 %s213, %s24
          %s215 = smul.u32 2, %s214
          %s217 = ssub.s32 384, 384
          %218 = vsyncadd %s208, %s217
          %s219 = smul.addr %s215, 3
          %s220 = smul.addr %s219, 64
          %s221 = scalar_lea.hbm %s0, %s220
          %s222 = sshll.u32 %s211, 4
          %s223 = int_to_ptr.vmem [resolvable:$true] %s222
          %228 = dma.hbm_to_vmem [thread:$0]  %s221, 384, %s223, %s208, 192, 192, 12
        $region36: #{tpu_custom_call.1} parent=31 // pred_fallthru
          _
      $region32: #{tpu_custom_call.1} parent=5 // pred_fallthru
        _
      %p229 = scmp.le.s32.totalorder 1, %s17
      %p230 = scmp.lt.s32.totalorder %s17, 5
      %p231 = pnand %p229, %p230
      %p232 = pneg %p231
      // Predicated region
      $region37: #{tpu_custom_call.1} parent=5 // pred_check
        _
      $region38: #{tpu_custom_call.1} parent=5 // pred_check_branch
        %234 = sbr.rel (%p231) target = $region40
      $region39: #{tpu_custom_call.1} parent=5 // pred_region
        %s235 = ssub.s32 %s17, 1
        %s236 = sand.u32 %s48, 1
        %s237 = scalar_lea.sflag [#allocation8], %s236
        %s238 = sand.u32 %s48, 1
        %s239 = smul.addr %s238, 24
        %s240 = scalar_lea.vmem [#allocation7], %s239
        // Predicated region
        $region41: #{tpu_custom_call.1} parent=39 // pred_check
          %p241 = pneg %p61
        $region42: #{tpu_custom_call.1} parent=39 // pred_check_branch
          %243 = sbr.rel (%p241) target = $region44
        $region43: #{tpu_custom_call.1} parent=39 // pred_region
          %244 = dma.done %s237, 384
        $region44: #{tpu_custom_call.1} parent=39 // pred_fallthru
          _
        %s245 = sand.u32 %s48, 1
        %s246 = scalar_lea.sflag [#allocation8], %s245
        %s247 = sand.u32 %s48, 1
        %s248 = smul.addr %s247, 24
        %s249 = scalar_lea.vmem [#allocation7], %s248
        %p250 = pneg %p61
        %p251 = pneg %p58
        %p252 = pneg %p82
        %p253 = pneg %p79
        %p254 = pneg %p103
        %p255 = pneg %p100
        %p256 = pneg %p124
        %p257 = pneg %p121
        %p258 = pneg %p145
        %p259 = pneg %p142
        %p260 = pneg %p173
        %p261 = pneg %p170
        %s262 = sand.u32 %s160, 1
        %s263 = scalar_lea.sflag [#allocation9], %s262
        %s264 = sand.u32 %s160, 1
        %s265 = smul.addr %s264, 32
        %s266 = scalar_lea.vmem [#allocation10], %s265
        %s267 = ssub.s32 1, %s26
        %s268 = smul.u32 %s27, %s267
        %s269 = sadd.s32 %s268, %s26
        %s270 = smul.u32 2, %s269
        %s271 = smul.u32 %s27, %s26
        %s272 = smul.u32 2, %s271
        %p274 = scmp.eq.s32.totalorder %s26, 0
        // Predicated region
        $region45: #{tpu_custom_call.1} parent=39 // pred_check
          %p275 = pneg %p274
        $region46: #{tpu_custom_call.1} parent=39 // pred_check_branch
          %277 = sbr.rel (%p275) target = $region48
        $region47: #{tpu_custom_call.1} parent=39 // pred_region
          %p278 = scmp.eq.s32.totalorder %s27, 0
          // Predicated region
          $region49: #{tpu_custom_call.1} parent=47 // pred_check
            %p279 = pneg %p278
          $region50: #{tpu_custom_call.1} parent=47 // pred_check_branch
            %281 = sbr.rel (%p279) target = $region52
          $region51: #{tpu_custom_call.1} parent=47 // pred_region
            %vm282 = vcmask 7168
            %283 = vst.msk [vmem:[#allocation3] sm:$0xff] %vm282, 0.0
            %284 = vst.msk [vmem:[#allocation4] sm:$0xff] %vm282, 0.0
          $region52: #{tpu_custom_call.1} parent=47 // pred_fallthru
            _
          %v285 = vld [vmem:[%s240] sm:$0xff]
          %v286 = vld [vmem:[%s240 + $0x8] sm:$0xf]
          %v287 = vld [vmem:[%s240 + $0xc] sm:$0xff]
          %v288 = vld [vmem:[%s240 + $0x14] sm:$0xf]
          %v289 = vld [vmem:[%s1] sm:$0xf]
          %v291 = vcombine.high %v285, %v285
          %v293 = vcombine.low %v285, %v285
          %294 = vrot.lane.b32.xlu0 %v293, 127
          %v295 = vpop.permute.xlu0 %294
          %296 = vrot.lane.b32.xlu0 %v285, 127
          %v297 = vpop.permute.xlu0 %296
          %vm298 = vcmask 1039360
          %v299 = vsel %vm298, %v295, %v297
          %302 = vrot.lane.b32.xlu0 %v285, 126
          %v303 = vpop.permute.xlu0 %302
          %304 = vrot.lane.b32.xlu0 %v291, 126
          %v305 = vpop.permute.xlu0 %304
          %vm306 = vcmask 1031168
          %v307 = vsel %vm306, %v303, %v305
          %310 = vrot.lane.b32.xlu0 %v293, 112
          %v311 = vpop.permute.xlu0 %310
          %312 = vrot.lane.b32.xlu0 %v285, 112
          %v313 = vpop.permute.xlu0 %312
          %vm314 = vcmask 916480
          %v315 = vsel %vm314, %v311, %v313
          %318 = vrot.lane.b32.xlu0 %v285, 111
          %v319 = vpop.permute.xlu0 %318
          %320 = vrot.lane.b32.xlu0 %v291, 111
          %v321 = vpop.permute.xlu0 %320
          %vm322 = vcmask 908288
          %v323 = vsel %vm322, %v319, %v321
          %326 = vrot.lane.b32.xlu0 %v293, 110
          %v327 = vpop.permute.xlu0 %326
          %328 = vrot.lane.b32.xlu0 %v285, 110
          %v329 = vpop.permute.xlu0 %328
          %vm330 = vcmask 900096
          %v331 = vsel %vm330, %v327, %v329
          %334 = vrot.lane.b32.xlu0 %v285, 96
          %v335 = vpop.permute.xlu0 %334
          %336 = vrot.lane.b32.xlu0 %v291, 96
          %v337 = vpop.permute.xlu0 %336
          %vm338 = vcmask 785408
          %v339 = vsel %vm338, %v335, %v337
          %v343 = vcombine.low %v286, %v286
          %344 = vrot.lane.b32.xlu0 %v293, 95
          %v345 = vpop.permute.xlu0 %344
          %346 = vrot.lane.b32.xlu0 %v285, 95
          %v347 = vpop.permute.xlu0 %346
          %348 = vrot.lane.b32.xlu0 %v343, 95
          %v349 = vpop.permute.xlu0 %348
          %vm350 = vcmask 777216
          %v351 = vsel %vm350, %v345, %v347
          %v352 = vsel %vm350, %v347, %v349
          %355 = vrot.lane.b32.xlu0 %v285, 94
          %v356 = vpop.permute.xlu0 %355
          %357 = vrot.lane.b32.xlu0 %v291, 94
          %v358 = vpop.permute.xlu0 %357
          %359 = vrot.lane.b32.xlu0 %v286, 94
          %v360 = vpop.permute.xlu0 %359
          %vm361 = vcmask 769024
          %v362 = vsel %vm361, %v356, %v358
          %v363 = vsel %vm361, %v358, %v360
          %vm366 = vcmask 1043456
          %v367 = vsel %vm366, %v285, %v299
          %v368 = vsel %vm366, %v291, %v297
          %v369 = vsel %vm366, %v307, %v315
          %v370 = vsel %vm366, %v305, %v313
          %v371 = vsel %vm366, %v323, %v331
          %v372 = vsel %vm366, %v321, %v329
          %v373 = vsel %vm366, %v339, %v351
          %v374 = vsel %vm366, %v337, %v352
          %v376 = vcombine.high %v287, %v287
          %v378 = vcombine.low %v287, %v287
          %379 = vrot.lane.b32.xlu0 %v378, 127
          %v380 = vpop.permute.xlu0 %379
          %381 = vrot.lane.b32.xlu0 %v287, 127
          %v382 = vpop.permute.xlu0 %381
          %v383 = vsel %vm298, %v380, %v382
          %386 = vrot.lane.b32.xlu0 %v287, 126
          %v387 = vpop.permute.xlu0 %386
          %388 = vrot.lane.b32.xlu0 %v376, 126
          %v389 = vpop.permute.xlu0 %388
          %v390 = vsel %vm306, %v387, %v389
          %393 = vrot.lane.b32.xlu0 %v378, 112
          %v394 = vpop.permute.xlu0 %393
          %395 = vrot.lane.b32.xlu0 %v287, 112
          %v396 = vpop.permute.xlu0 %395
          %v397 = vsel %vm314, %v394, %v396
          %400 = vrot.lane.b32.xlu0 %v287, 111
          %v401 = vpop.permute.xlu0 %400
          %402 = vrot.lane.b32.xlu0 %v376, 111
          %v403 = vpop.permute.xlu0 %402
          %v404 = vsel %vm322, %v401, %v403
          %407 = vrot.lane.b32.xlu0 %v378, 110
          %v408 = vpop.permute.xlu0 %407
          %409 = vrot.lane.b32.xlu0 %v287, 110
          %v410 = vpop.permute.xlu0 %409
          %v411 = vsel %vm330, %v408, %v410
          %414 = vrot.lane.b32.xlu0 %v287, 96
          %v415 = vpop.permute.xlu0 %414
          %416 = vrot.lane.b32.xlu0 %v376, 96
          %v417 = vpop.permute.xlu0 %416
          %v418 = vsel %vm338, %v415, %v417
          %v422 = vcombine.low %v288, %v288
          %423 = vrot.lane.b32.xlu0 %v378, 95
          %v424 = vpop.permute.xlu0 %423
          %425 = vrot.lane.b32.xlu0 %v287, 95
          %v426 = vpop.permute.xlu0 %425
          %427 = vrot.lane.b32.xlu0 %v422, 95
          %v428 = vpop.permute.xlu0 %427
          %v429 = vsel %vm350, %v424, %v426
          %v430 = vsel %vm350, %v426, %v428
          %433 = vrot.lane.b32.xlu0 %v287, 94
          %v434 = vpop.permute.xlu0 %433
          %435 = vrot.lane.b32.xlu0 %v376, 94
          %v436 = vpop.permute.xlu0 %435
          %437 = vrot.lane.b32.xlu0 %v288, 94
          %v438 = vpop.permute.xlu0 %437
          %v439 = vsel %vm361, %v434, %v436
          %v440 = vsel %vm361, %v436, %v438
          %v441 = vsel %vm366, %v287, %v383
          %v442 = vsel %vm366, %v376, %v382
          %v443 = vsel %vm366, %v390, %v397
          %v444 = vsel %vm366, %v389, %v396
          %v445 = vsel %vm366, %v404, %v411
          %v446 = vsel %vm366, %v403, %v410
          %v447 = vsel %vm366, %v418, %v429
          %v448 = vsel %vm366, %v417, %v430
          %457 = vrot.lane.b32.xlu0 %v441, 96
          %v458 = vpop.permute.xlu0 %457
          %459 = vrot.lane.b32.xlu0 %v442, 96
          %v460 = vpop.permute.xlu0 %459
          %461 = vrot.lane.b32.xlu0 %v443, 96
          %v462 = vpop.permute.xlu0 %461
          %463 = vrot.lane.b32.xlu0 %v444, 96
          %v464 = vpop.permute.xlu0 %463
          %465 = vrot.lane.b32.xlu0 %v445, 96
          %v466 = vpop.permute.xlu0 %465
          %467 = vrot.lane.b32.xlu0 %v446, 96
          %v468 = vpop.permute.xlu0 %467
          %469 = vrot.lane.b32.xlu0 %v447, 96
          %v470 = vpop.permute.xlu0 %469
          %471 = vrot.lane.b32.xlu0 %v448, 96
          %v472 = vpop.permute.xlu0 %471
          %473 = vrot.lane.b32.xlu0 %v439, 96
          %v474 = vpop.permute.xlu0 %473
          %475 = vrot.lane.b32.xlu0 %v440, 96
          %v476 = vpop.permute.xlu0 %475
          %v477 = vsel %vm338, %v458, %v460
          %v478 = vsel %vm338, %v462, %v464
          %v479 = vsel %vm338, %v466, %v468
          %v480 = vsel %vm338, %v470, %v472
          %v481 = vsel %vm338, %v474, %v476
          %v497 = vsel %vm338, %v368, %v458
          %v498 = vsel %vm338, %v370, %v462
          %v499 = vsel %vm338, %v372, %v466
          %v500 = vsel %vm338, %v374, %v470
          %v501 = vsel %vm338, %v363, %v474
          %v502 = vpack.c.bf16 %v369, %v367
          %v503 = vpack.c.bf16 %v498, %v497
          %v504 = vpack.c.bf16 %v478, %v477
          %v505 = vpack.c.bf16 %v464, %v460
          %v506 = vpack.c.bf16 %v373, %v371
          %v507 = vpack.c.bf16 %v500, %v499
          %v508 = vpack.c.bf16 %v480, %v479
          %v509 = vpack.c.bf16 %v472, %v468
          %v510 = vpack.c.bf16 %v362, %v362
          %v511 = vpack.c.bf16 %v501, %v501
          %v512 = vpack.c.bf16 %v481, %v481
          %v513 = vpack.c.bf16 %v476, %v476
          %vm514 = vcmask 293888
          %v516 = vsel %vm514, %v289, 0
          %vm518 = vcmask 1041408
          %v520 = vsel %vm518, %v510, 0
          %v523 = vsel %vm518, %v511, 0
          %v526 = vsel %vm518, %v512, 0
          %v529 = vsel %vm518, %v513, 0
          %531 = vmatprep.subr.bf16.mxu0 %v503
          %532 = vmatpush1.bf16.msra.mxu0 %v502
          %533 = vmatprep.subr.bf16.mxu0 %v507
          %534 = vmatpush1.bf16.msra.mxu0 %v506
          %535 = vmatprep.subr.bf16.mxu0 %v523
          %536 = vmatpush1.bf16.msra.mxu0 %v520
          %537 = vmatprep.subr.bf16.mxu0 0
          %538 = vmatpush1.bf16.msra.mxu0 0
          %539 = vmatprep.subr.bf16.mxu0 0
          %540 = vmatpush1.bf16.msra.mxu0 0
          %541 = vmatprep.subr.bf16.mxu0 0
          %542 = vmatpush1.bf16.msra.mxu0 0
          %543 = vmatprep.subr.bf16.mxu0 0
          %544 = vmatpush1.bf16.msra.mxu0 0
          %545 = vmatprep.subr.bf16.mxu0 0
          %546 = vmatpush1.bf16.msra.mxu0 0
          %547 = vmatprep.subr.bf16.mxu0 0
          %548 = vmatpush1.bf16.msra.mxu0 0
          %549 = vmatprep.subr.bf16.mxu0 0
          %550 = vmatpush1.bf16.msra.mxu0 0
          %551 = vmatprep.subr.bf16.mxu0 0
          %552 = vmatpush1.bf16.msra.mxu0 0
          %553 = vmatprep.subr.bf16.mxu0 0
          %554 = vmatpush1.bf16.msra.mxu0 0
          %555 = vmatprep.subr.bf16.mxu0 0
          %556 = vmatpush1.bf16.msra.mxu0 0
          %557 = vmatprep.subr.bf16.mxu0 0
          %558 = vmatpush1.bf16.msra.mxu0 0
          %559 = vmatprep.subr.bf16.mxu0 0
          %560 = vmatpush1.bf16.msra.mxu0 0
          %561 = vmatprep.subr.bf16.mxu0 0
          %562 = vmatpush1.bf16.msra.mxu0 0
          %563 = vmatprep.mubr.bf16.mxu0 0
          %564 = vmatmul.mubr.bf16.gmra.mrb[0].mxu0 %v516
          %v565 = vpop.f32.mrb[0].mxu0
          %v566 = vadd.f32 0.0, %v565
          %v567 = vpop.f32.mrb[0].mxu0
          %v568 = vadd.f32 0.0, %v567
          %v569 = vpop.f32.mrb[0].mxu0
          %v570 = vpop.f32.mrb[0].mxu0
          %571 = vdwg.mxu0
          %572 = vmatprep.subr.bf16.mxu0 %v505
          %573 = vmatpush1.bf16.msra.mxu0 %v504
          %574 = vmatprep.subr.bf16.mxu0 %v509
          %575 = vmatpush1.bf16.msra.mxu0 %v508
          %576 = vmatprep.subr.bf16.mxu0 %v529
          %577 = vmatpush1.bf16.msra.mxu0 %v526
          %578 = vmatprep.subr.bf16.mxu0 0
          %579 = vmatpush1.bf16.msra.mxu0 0
          %580 = vmatprep.subr.bf16.mxu0 0
          %581 = vmatpush1.bf16.msra.mxu0 0
          %582 = vmatprep.subr.bf16.mxu0 0
          %583 = vmatpush1.bf16.msra.mxu0 0
          %584 = vmatprep.subr.bf16.mxu0 0
          %585 = vmatpush1.bf16.msra.mxu0 0
          %586 = vmatprep.subr.bf16.mxu0 0
          %587 = vmatpush1.bf16.msra.mxu0 0
          %588 = vmatprep.subr.bf16.mxu0 0
          %589 = vmatpush1.bf16.msra.mxu0 0
          %590 = vmatprep.subr.bf16.mxu0 0
          %591 = vmatpush1.bf16.msra.mxu0 0
          %592 = vmatprep.subr.bf16.mxu0 0
          %593 = vmatpush1.bf16.msra.mxu0 0
          %594 = vmatprep.subr.bf16.mxu0 0
          %595 = vmatpush1.bf16.msra.mxu0 0
          %596 = vmatprep.subr.bf16.mxu0 0
          %597 = vmatpush1.bf16.msra.mxu0 0
          %598 = vmatprep.subr.bf16.mxu0 0
          %599 = vmatpush1.bf16.msra.mxu0 0
          %600 = vmatprep.subr.bf16.mxu0 0
          %601 = vmatpush1.bf16.msra.mxu0 0
          %602 = vmatprep.subr.bf16.mxu0 0
          %603 = vmatpush1.bf16.msra.mxu0 0
          %604 = vmatprep.mubr.bf16.mxu0 0
          %605 = vmatmul.mubr.bf16.gmra.mrb[0].mxu0 %v516
          %v606 = vpop.f32.mrb[0].mxu0
          %v607 = vadd.f32 0.0, %v606
          %v608 = vpop.f32.mrb[0].mxu0
          %v609 = vadd.f32 0.0, %v608
          %v610 = vpop.f32.mrb[0].mxu0
          %v611 = vpop.f32.mrb[0].mxu0
          %612 = vdwg.mxu0
          %v613 = vld [vmem:[%s2] sm:$0xf]
          %v615 = vlaneseq
          %v616 = vshrl.u32 %v615, 7
          %v617 = vsub.s32 0, %v616
          %v618 = vrot.slane %v613, %v617
          %v619 = vlaneseq
          %v620 = vshrl.u32 %v619, 7
          %v621 = vsub.s32 1, %v620
          %v622 = vrot.slane %v613, %v621
          %v623 = vlaneseq
          %v624 = vshrl.u32 %v623, 7
          %v625 = vsub.s32 2, %v624
          %v626 = vrot.slane %v613, %v625
          %v627 = vlaneseq
          %v628 = vshrl.u32 %v627, 7
          %v629 = vsub.s32 3, %v628
          %v630 = vrot.slane %v613, %v629
          %v635 = vmul.f32 %v566, %v618
          %v636 = vmul.f32 %v568, %v622
          %v637 = vmul.f32 %v607, %v626
          %v638 = vmul.f32 %v609, %v630
          %v639 = vld [vmem:[#allocation3] sm:$0xff]
          %v640 = vadd.f32 %v635, %v636
          %v641 = vadd.f32 %v640, %v637
          %vm642 = vcmask 523264
          %v643 = vsel %vm642, %v638, 0.0
          %v644 = vadd.f32 %v641, %v643
          %645 = vadd.xlane.f32.xlu0 %v644
          %v646 = vpop.xlane.xlu0 %645
          %v647 = vadd.f32 %v639, %v646
          %vm648 = vcmask 7168
          %649 = vst.msk [vmem:[#allocation3] sm:$0xff] %vm648, %v647
          %v650 = vld [vmem:[#allocation4] sm:$0xff]
          %v651 = vmul.f32 %v635, %v635
          %v652 = vmul.f32 %v636, %v636
          %v653 = vmul.f32 %v637, %v637
          %v654 = vmul.f32 %v638, %v638
          %v655 = vadd.f32 %v651, %v652
          %v656 = vadd.f32 %v655, %v653
          %v657 = vsel %vm642, %v654, 0.0
          %v658 = vadd.f32 %v656, %v657
          %659 = vadd.xlane.f32.xlu0 %v658
          %v660 = vpop.xlane.xlu0 %659
          %v661 = vadd.f32 %v650, %v660
          %662 = vst.msk [vmem:[#allocation4] sm:$0xff] %vm648, %v661
          %v663 = vpack.c.bf16 %v566, %v566
          %v664 = vpack.c.bf16 %v568, %v568
          %v665 = vpack.c.bf16 %v607, %v607
          %v666 = vpack.c.bf16 %v609, %v609
          %v671 = vunpack.c.l.b16 %v663
          %v672 = vunpack.c.l.b16 %v664
          %v673 = vunpack.c.l.b16 %v665
          %v674 = vunpack.c.l.b16 %v666
          %v675 = vpack.c.b16 %v672, %v671
          %v676 = vpack.c.b16 %v674, %v673
          %s679 = smul.u32 %s27, 4
          %s680 = smul.addr %s679, 4
          %s681 = scalar_lea.vmem [#allocation2], %s680
          %682 = vst [vmem:[%s681] sm:$0xff] %v675
          %vm683 = vcmask 523268
          %vm684 = vmor %vm683, %vm366
          %685 = vst.msk [vmem:[%s681 + $0x8] sm:$0xff] %vm684, %v676
        $region48: #{tpu_custom_call.1} parent=39 // pred_fallthru
          _
        %p686 = scmp.eq.s32.totalorder %s26, 1
        // Predicated region
        $region53: #{tpu_custom_call.1} parent=39 // pred_check
          %p687 = pneg %p686
        $region54: #{tpu_custom_call.1} parent=39 // pred_check_branch
          %689 = sbr.rel (%p687) target = $region56
        $region55: #{tpu_custom_call.1} parent=39 // pred_region
          %p690 = scmp.eq.s32.totalorder %s27, 0
          // Predicated region
          $region57: #{tpu_custom_call.1} parent=55 // pred_check
            %p691 = pneg %p690
          $region58: #{tpu_custom_call.1} parent=55 // pred_check_branch
            %693 = sbr.rel (%p691) target = $region60
          $region59: #{tpu_custom_call.1} parent=55 // pred_region
            %v694 = vld [vmem:[#allocation3] sm:$0xff]
            %v695 = vmul.f32 %v694, 0.0012755102
            %v696 = vld [vmem:[#allocation4] sm:$0xff]
            %v697 = vmul.f32 %v696, 0.0012755102
            %v698 = vmul.f32 %v695, %v695
            %v699 = vsub.f32 %v697, %v698
            %v700 = vmax.f32 %v699, 0.0
            %v701 = vld [vmem:[%s3] sm:$0xff]
            %v702 = vadd.f32 %v700, 1e-05
            %v703 = vrsqrt.pop %v702
            %v704 = vmul.f32 %v701, %v703
            %vm705 = vcmask 7168
            %706 = vst.msk [vmem:[#allocation5] sm:$0xff] %vm705, %v704
            %v707 = vld [vmem:[%s4] sm:$0xff]
            %v708 = vmul.f32 %v695, %v704
            %v709 = vsub.f32 %v707, %v708
            %710 = vst.msk [vmem:[#allocation6] sm:$0xff] %vm705, %v709
          $region60: #{tpu_custom_call.1} parent=55 // pred_fallthru
            _
          %s711 = smul.u32 %s27, 4
          %s712 = smul.addr %s711, 4
          %s713 = scalar_lea.vmem [#allocation2], %s712
          %v714 = vld [vmem:[%s713] sm:$0xff]
          %v715 = vld [vmem:[%s713 + $0x8] sm:$0xff]
          %v716 = vunpack.c.l.bf16 %v714
          %v717 = vunpack.c.h.bf16 %v714
          %v718 = vunpack.c.l.bf16 %v715
          %v719 = vunpack.c.h.bf16 %v715
          %v720 = vld [vmem:[#allocation5] sm:$0xff]
          %722 = vset.pattern.permute.xlu0 0
          %723 = vperm.xlu0 %722, %v720
          %v724 = vpop.permute.xlu0 %723
          %v726 = vmul.f32 %v716, %v724
          %v727 = vmul.f32 %v717, %v724
          %v728 = vmul.f32 %v718, %v724
          %v729 = vmul.f32 %v719, %v724
          %v730 = vld [vmem:[#allocation6] sm:$0xff]
          %732 = vset.pattern.permute.xlu0 0
          %733 = vperm.xlu0 %732, %v730
          %v734 = vpop.permute.xlu0 %733
          %v736 = vadd.f32 %v726, %v734
          %v737 = vadd.f32 %v727, %v734
          %v738 = vadd.f32 %v728, %v734
          %v739 = vadd.f32 %v729, %v734
          %v740 = vmax.f32 %v736, 0.0
          %v741 = vmax.f32 %v737, 0.0
          %v742 = vmax.f32 %v738, 0.0
          %v743 = vmax.f32 %v739, 0.0
          %vm744 = vcmask 113664
          %745 = vst.msk [vmem:[%s266] sm:$0xff] %vm744, %v740
          %747 = vrot.lane.b32.xlu0 %v740, 126
          %v748 = vpop.permute.xlu0 %747
          %vm750 = vcmask 228464
          %751 = vst.msk [vmem:[%s266] sm:$0xff] %vm750, %v748
          %752 = vrot.lane.b32.xlu0 %v740, 124
          %v753 = vpop.permute.xlu0 %752
          %vm755 = vcmask 343264
          %756 = vst.msk [vmem:[%s266] sm:$0xff] %vm755, %v753
          %757 = vrot.lane.b32.xlu0 %v740, 122
          %v758 = vpop.permute.xlu0 %757
          %vm760 = vcmask 458064
          %761 = vst.msk [vmem:[%s266] sm:$0xff] %vm760, %v758
          %762 = vrot.lane.b32.xlu0 %v740, 120
          %v763 = vpop.permute.xlu0 %762
          %vm765 = vcmask 572864
          %766 = vst.msk [vmem:[%s266] sm:$0xff] %vm765, %v763
          %767 = vrot.lane.b32.xlu0 %v740, 118
          %v768 = vpop.permute.xlu0 %767
          %vm770 = vcmask 687664
          %771 = vst.msk [vmem:[%s266] sm:$0xff] %vm770, %v768
          %772 = vrot.lane.b32.xlu0 %v740, 116
          %v773 = vpop.permute.xlu0 %772
          %vm775 = vcmask 802464
          %776 = vst.msk [vmem:[%s266] sm:$0xff] %vm775, %v773
          %777 = vrot.lane.b32.xlu0 %v740, 114
          %v778 = vpop.permute.xlu0 %777
          %vm780 = vcmask 917264
          %781 = vst.msk [vmem:[%s266] sm:$0xff] %vm780, %v778
          %783 = vrot.lane.b32.xlu0 %v741, 112
          %v784 = vpop.permute.xlu0 %783
          %vm786 = vcmask 1032064
          %787 = vst.msk [vmem:[%s266] sm:$0xff] %vm786, %v784
          %788 = vrot.lane.b32.xlu0 %v741, 110
          %v789 = vpop.permute.xlu0 %788
          %vm791 = vcmask 1048560
          %792 = vst.msk [vmem:[%s266] sm:$0xff] %vm791, %v789
          %vm793 = vcmask 97280
          %794 = vst.msk [vmem:[%s266 + $0x8] sm:$0xff] %vm793, %v789
          %795 = vrot.lane.b32.xlu0 %v741, 108
          %v796 = vpop.permute.xlu0 %795
          %vm798 = vcmask 212064
          %799 = vst.msk [vmem:[%s266 + $0x8] sm:$0xff] %vm798, %v796
          %800 = vrot.lane.b32.xlu0 %v741, 106
          %v801 = vpop.permute.xlu0 %800
          %vm803 = vcmask 326864
          %804 = vst.msk [vmem:[%s266 + $0x8] sm:$0xff] %vm803, %v801
          %805 = vrot.lane.b32.xlu0 %v741, 104
          %v806 = vpop.permute.xlu0 %805
          %vm808 = vcmask 441664
          %809 = vst.msk [vmem:[%s266 + $0x8] sm:$0xff] %vm808, %v806
          %810 = vrot.lane.b32.xlu0 %v741, 102
          %v811 = vpop.permute.xlu0 %810
          %vm813 = vcmask 556464
          %814 = vst.msk [vmem:[%s266 + $0x8] sm:$0xff] %vm813, %v811
          %815 = vrot.lane.b32.xlu0 %v741, 32
          %v816 = vpop.permute.xlu0 %815
          %s818 = scalar_lea.vmem %s266, 16 [#allocation10]
          %819 = vst.msk [vmem:[%s818] sm:$0xff] %vm744, %v816
          %820 = vrot.lane.b32.xlu0 %v741, 30
          %v821 = vpop.permute.xlu0 %820
          %823 = vst.msk [vmem:[%s818] sm:$0xff] %vm750, %v821
          %825 = vrot.lane.b32.xlu0 %v742, 28
          %v826 = vpop.permute.xlu0 %825
          %828 = vst.msk [vmem:[%s818] sm:$0xff] %vm755, %v826
          %829 = vrot.lane.b32.xlu0 %v742, 26
          %v830 = vpop.permute.xlu0 %829
          %832 = vst.msk [vmem:[%s818] sm:$0xff] %vm760, %v830
          %833 = vrot.lane.b32.xlu0 %v742, 24
          %v834 = vpop.permute.xlu0 %833
          %836 = vst.msk [vmem:[%s818] sm:$0xff] %vm765, %v834
          %837 = vrot.lane.b32.xlu0 %v742, 22
          %v838 = vpop.permute.xlu0 %837
          %840 = vst.msk [vmem:[%s818] sm:$0xff] %vm770, %v838
          %841 = vrot.lane.b32.xlu0 %v742, 20
          %v842 = vpop.permute.xlu0 %841
          %844 = vst.msk [vmem:[%s818] sm:$0xff] %vm775, %v842
          %845 = vrot.lane.b32.xlu0 %v742, 18
          %v846 = vpop.permute.xlu0 %845
          %848 = vst.msk [vmem:[%s818] sm:$0xff] %vm780, %v846
          %849 = vrot.lane.b32.xlu0 %v742, 16
          %v850 = vpop.permute.xlu0 %849
          %852 = vst.msk [vmem:[%s818] sm:$0xff] %vm786, %v850
          %853 = vrot.lane.b32.xlu0 %v742, 14
          %v854 = vpop.permute.xlu0 %853
          %856 = vst.msk [vmem:[%s818] sm:$0xff] %vm791, %v854
          %857 = vst.msk [vmem:[%s818 + $0x8] sm:$0xff] %vm793, %v854
          %859 = vrot.lane.b32.xlu0 %v743, 12
          %v860 = vpop.permute.xlu0 %859
          %862 = vst.msk [vmem:[%s818 + $0x8] sm:$0xff] %vm798, %v860
          %863 = vrot.lane.b32.xlu0 %v743, 10
          %v864 = vpop.permute.xlu0 %863
          %866 = vst.msk [vmem:[%s818 + $0x8] sm:$0xff] %vm803, %v864
          %867 = vrot.lane.b32.xlu0 %v743, 8
          %v868 = vpop.permute.xlu0 %867
          %870 = vst.msk [vmem:[%s818 + $0x8] sm:$0xff] %vm808, %v868
          %871 = vrot.lane.b32.xlu0 %v743, 6
          %v872 = vpop.permute.xlu0 %871
          %874 = vst.msk [vmem:[%s818 + $0x8] sm:$0xff] %vm813, %v872
        $region56: #{tpu_custom_call.1} parent=39 // pred_fallthru
          _
        %s875 = sand.u32 %s160, 1
        %s876 = scalar_lea.sflag [#allocation9], %s875
        %s877 = sand.u32 %s160, 1
        %s878 = smul.addr %s877, 32
        %s879 = scalar_lea.vmem [#allocation10], %s878
        // Predicated region
        $region61: #{tpu_custom_call.1} parent=39 // pred_check
          %p880 = pneg %p170
        $region62: #{tpu_custom_call.1} parent=39 // pred_check_branch
          %882 = sbr.rel (%p880) target = $region64
        $region63: #{tpu_custom_call.1} parent=39 // pred_region
          %s883 = smul.u32 %s27, %s26
          %s884 = smul.u32 2, %s883
          %s886 = ssub.s32 512, 512
          %887 = vsyncadd %s876, %s886
          %s888 = smul.addr %s884, 2
          %s889 = smul.addr %s888, 128
          %s890 = scalar_lea.hbm %s5, %s889
          %s891 = sshll.u32 %s879, 4
          %s892 = int_to_ptr.vmem [resolvable:$true] %s891
          %897 = dma.vmem_to_hbm [thread:$0]  %s892, 512, %s890, %s876, 256, 256, 16
        $region64: #{tpu_custom_call.1} parent=39 // pred_fallthru
          _
      $region40: #{tpu_custom_call.1} parent=5 // pred_fallthru
        _
      %p898 = scmp.le.s32.totalorder 2, %s17
      // Predicated region
      $region65: #{tpu_custom_call.1} parent=5 // pred_check
        %p899 = pneg %p898
      $region66: #{tpu_custom_call.1} parent=5 // pred_check_branch
        %901 = sbr.rel (%p899) target = $region68
      $region67: #{tpu_custom_call.1} parent=5 // pred_region
        %s902 = ssub.s32 %s17, 2
        // Predicated region
        $region69: #{tpu_custom_call.1} parent=67 // pred_check
          %p903 = pneg %p176
        $region70: #{tpu_custom_call.1} parent=67 // pred_check_branch
          %905 = sbr.rel (%p903) target = $region72
        $region71: #{tpu_custom_call.1} parent=67 // pred_region
          %s906 = sand.u32 %s161, 1
          %s907 = scalar_lea.sflag [#allocation9], %s906
          %s908 = sand.u32 %s161, 1
          %s909 = smul.addr %s908, 32
          %s910 = scalar_lea.vmem [#allocation10], %s909
          %911 = dma.done %s907, 512
        $region72: #{tpu_custom_call.1} parent=67 // pred_fallthru
          _
      $region68: #{tpu_custom_call.1} parent=5 // pred_fallthru
        _
    $region6: #{tpu_custom_call.1} parent=1 // loop_footer
      %s21 = sadd.s32 1, %s17
    $region7: #{tpu_custom_call.1} parent=1 // loop_footer_branch
      %16 = sbr.rel target = $region3
    $region8: #{tpu_custom_call.1} parent=1 // loop_exit
      _
    %912 = vsyncpa [#allocation8], 1
    %s913 = scalar_lea.sflag [#allocation8], 1
    %914 = vsyncpa %s913, 1
    %915 = vsyncpa [#allocation9], 1
    %s916 = scalar_lea.sflag [#allocation9], 1
    %917 = vsyncpa %s916, 1

</llo_original>
